<compile_context>
chip_gen: v5e
topology: v5e:2x2
jax: 0.10.0
libtpu: 0.0.40
codegen_flags: <defaults>
</compile_context>

<pallas_src>
import jax
import jax.numpy as jnp
import numpy as np
from jax import lax
from jax.experimental import pallas as pl
from jax.experimental.pallas import tpu as pltpu

# ----------------------------- config ---------------------------------------
NUM_EMB = 25
EMB_DIM = 32
HIDDEN_DIM = 32
NUM_LAYERS = 2          # kernel hard-codes 2 layers (module default)
LINEAR_DIM = 32
SEQ_LEN = 8
BATCH = 2               # number of (L, R) pairs; kernel runs 2*BATCH rows


# --------------------------- fused Pallas kernel -----------------------------
def fused_twohead_kernel(x_ref, w0_ref, b0_ref, w1_ref, b1_ref,
                         wl_ref, wr_ref, blin_ref, wout_ref, bout_ref,
                         out_ref):
    """2-layer LSTM over time (L/R batch-stacked) + head epilogue.

    x_ref:   (T, 2B, E) embedded inputs, L rows then R rows along axis 1.
    w0_ref:  (E+H, 4H)   stacked [W_ih0; W_hh0], PyTorch gate order (i,f,g,o).
    w1_ref:  (2H,  4H)   stacked [W_ih1; W_hh1].
    b*_ref:  (1, 4H)     b_ih + b_hh.
    wl/wr:   (H, L)      Linear(2H->L) weight split into the h_L / h_R halves.
    wout:    (L, 1), bout: (1, 1).
    out_ref: (B, 128)    score broadcast along lanes (lane-dense store).
    """
    T, B2, _ = x_ref.shape
    H = HIDDEN_DIM
    B = B2 // 2

    # Hoist weight loads and bias broadcasts out of the time loop.
    w0 = w0_ref[...]
    w1 = w1_ref[...]
    b0 = jnp.broadcast_to(b0_ref[...], (B2, 4 * H))
    b1 = jnp.broadcast_to(b1_ref[...], (B2, 4 * H))

    def cell(xh, w, b, c):
        gates = jnp.dot(xh, w, preferred_element_type=jnp.float32) + b
        i = jax.nn.sigmoid(gates[:, 0 * H:1 * H])
        f = jax.nn.sigmoid(gates[:, 1 * H:2 * H])
        g = jnp.tanh(gates[:, 2 * H:3 * H])
        o = jax.nn.sigmoid(gates[:, 3 * H:4 * H])
        c_new = f * c + i * g
        h_new = o * jnp.tanh(c_new)
        return h_new, c_new

    def step(t, carry):
        h0, c0, h1, c1 = carry
        x_t = x_ref[t]                                          # (2B, E)
        h0n, c0n = cell(jnp.concatenate([x_t, h0], axis=-1), w0, b0, c0)
        h1n, c1n = cell(jnp.concatenate([h0n, h1], axis=-1), w1, b1, c1)
        return h0n, c0n, h1n, c1n

    z = jnp.zeros((B2, H), jnp.float32)
    _, _, h_top, _ = lax.fori_loop(0, T, step, (z, z, z, z), unroll=True)

    # Head epilogue: concat([h_L, h_R]) @ W_lin expressed as split-weight sum.
    h_L = h_top[:B]
    h_R = h_top[B:]
    hid = (jnp.dot(h_L, wl_ref[...], preferred_element_type=jnp.float32)
           + jnp.dot(h_R, wr_ref[...], preferred_element_type=jnp.float32)
           + blin_ref[...])
    hid = jnp.maximum(hid, 0.0)
    score = (jnp.dot(hid, wout_ref[...], preferred_element_type=jnp.float32)
             + bout_ref[...])                                   # (B, 1)
    out_ref[...] = jnp.broadcast_to(score, out_ref.shape)       # lane-dense


# --------------------------- wrappers ----------------------------------------
def embed_tokens(idx, table):
    """idx: (T, B) int32 with -1 meaning zero embedding -> (T, B, E)."""
    safe = jnp.clip(idx, 0, table.shape[0] - 1)
    e = table[safe]
    return jnp.where((idx == -1)[..., None], jnp.float32(0.0), e)


@jax.jit
def two_head_lstm_forward(tokens_L, tokens_R, params):
    # NB: the reference `emb()` uses embeddings_L for BOTH streams, and the
    # same shared LSTM, so L and R are stacked along batch and run once.
    B = tokens_L.shape[1]
    tokens_all = jnp.concatenate([tokens_L, tokens_R], axis=1)   # (T, 2B)
    x_all = embed_tokens(tokens_all, params["emb_table"])        # (T, 2B, E)

    vmem = pl.BlockSpec(memory_space=pltpu.MemorySpace.VMEM)
    out = pl.pallas_call(
        fused_twohead_kernel,
        out_shape=jax.ShapeDtypeStruct((B, 128), jnp.float32),
        in_specs=[vmem] * 10,
        out_specs=vmem,
    )(x_all, params["w0"], params["b0"], params["w1"], params["b1"],
      params["wlin_l"], params["wlin_r"], params["blin"],
      params["wout"], params["bout"])
    return out[:, 0]                                             # (B,)


# --------------------------- params & reference ------------------------------
def init_params(key):
    H, E, L = HIDDEN_DIM, EMB_DIM, LINEAR_DIM
    ks = jax.random.split(key, 14)
    u = lambda k, shape, bound: jax.random.uniform(
        k, shape, jnp.float32, -bound, bound)
    s = 1.0 / np.sqrt(H)
    params = {
        "emb_table": jax.random.normal(ks[0], (NUM_EMB, E), jnp.float32),
        # layer 0 / 1: [W_ih; W_hh] pre-stacked to (in+H, 4H); gate order i,f,g,o
        "w0": jnp.concatenate([u(ks[1], (E, 4 * H), s),
                               u(ks[2], (H, 4 * H), s)], axis=0),
        "b0": u(ks[3], (1, 4 * H), s) + u(ks[4], (1, 4 * H), s),
        "w1": jnp.concatenate([u(ks[5], (H, 4 * H), s),
                               u(ks[6], (H, 4 * H), s)], axis=0),
        "b1": u(ks[7], (1, 4 * H), s) + u(ks[8], (1, 4 * H), s),
        # Linear(2H -> L) split into the h_L half and h_R half (concat trick)
        "wlin_l": u(ks[9], (H, L), 1.0 / np.sqrt(2 * H)),
        "wlin_r": u(ks[10], (H, L), 1.0 / np.sqrt(2 * H)),
        "blin": u(ks[11], (1, L), 1.0 / np.sqrt(2 * H)),
        "wout": u(ks[12], (L, 1), 1.0 / np.sqrt(L)),
        "bout": u(ks[13], (1, 1), 1.0 / np.sqrt(L)),
    }
    return params


def _ref_cell(x, h, c, w, b):
    H = h.shape[-1]
    gates = jnp.concatenate([x, h], axis=-1) @ w + b
    i = jax.nn.sigmoid(gates[:, 0 * H:1 * H])
    f = jax.nn.sigmoid(gates[:, 1 * H:2 * H])
    g = jnp.tanh(gates[:, 2 * H:3 * H])
    o = jax.nn.sigmoid(gates[:, 3 * H:4 * H])
    c_new = f * c + i * g
    return o * jnp.tanh(c_new), c_new


def reference_forward(tokens_L, tokens_R, params):
    """Pure-JAX reference (lax.scan LSTM) for correctness checking."""
    def lstm2(x_seq):
        B = x_seq.shape[1]
        H = HIDDEN_DIM

        def step(carry, x_t):
            h0, c0, h1, c1 = carry
            h0n, c0n = _ref_cell(x_t, h0, c0, params["w0"], params["b0"])
            h1n, c1n = _ref_cell(h0n, h1, c1, params["w1"], params["b1"])
            return (h0n, c0n, h1n, c1n), None

        init = tuple(jnp.zeros((B, H), jnp.float32) for _ in range(4))
        (_, _, h1, _), _ = jax.lax.scan(step, init, x_seq)
        return h1

    h_L = lstm2(embed_tokens(tokens_L, params["emb_table"]))
    h_R = lstm2(embed_tokens(tokens_R, params["emb_table"]))
    h = h_L @ params["wlin_l"] + h_R @ params["wlin_r"] + params["blin"]
    h = jnp.maximum(h, 0.0)
    return (h @ params["wout"] + params["bout"]).reshape(-1)


# ------------------------------- main ----------------------------------------
if __name__ == "__main__":
    key = jax.random.PRNGKey(0)
    k_p, k_l, k_r = jax.random.split(key, 3)
    params = init_params(k_p)

    # token sequences in [0, NUM_EMB), with a couple of -1 "zero embedding" pads
    tokens_L = jax.random.randint(k_l, (SEQ_LEN, BATCH), 0, NUM_EMB, jnp.int32)
    tokens_R = jax.random.randint(k_r, (SEQ_LEN, BATCH), 0, NUM_EMB, jnp.int32)
    tokens_L = tokens_L.at[0, 0].set(-1)
    tokens_R = tokens_R.at[-1, 1].set(-1)

    out = jax.block_until_ready(two_head_lstm_forward(tokens_L, tokens_R, params))
    ref = jax.block_until_ready(reference_forward(tokens_L, tokens_R, params))

    assert out.shape == (BATCH,), out.shape
    np.testing.assert_allclose(np.asarray(out), np.asarray(ref),
                               rtol=1e-5, atol=1e-5)
    print("KERNEL_OK")
</pallas_src>

<mosaic_0001>
module attributes {stable_mosaic.version = 11 : i64} {
  func.func @fused_twohead_kernel(%arg0: memref<8x4x32xf32, #tpu.memory_space<vmem>>, %arg1: memref<64x128xf32, #tpu.memory_space<vmem>>, %arg2: memref<1x128xf32, #tpu.memory_space<vmem>>, %arg3: memref<64x128xf32, #tpu.memory_space<vmem>>, %arg4: memref<1x128xf32, #tpu.memory_space<vmem>>, %arg5: memref<32x32xf32, #tpu.memory_space<vmem>>, %arg6: memref<32x32xf32, #tpu.memory_space<vmem>>, %arg7: memref<1x32xf32, #tpu.memory_space<vmem>>, %arg8: memref<32x1xf32, #tpu.memory_space<vmem>>, %arg9: memref<1x1xf32, #tpu.memory_space<vmem>>, %arg10: memref<2x128xf32, #tpu.memory_space<vmem>>) attributes {dimension_semantics = [], scalar_prefetch = 0 : i64, scratch_operands = 0 : i64, tpu.core_type = #tpu.core_type<tc>} {
    %c0 = arith.constant 0 : index
    %c0_0 = arith.constant 0 : index
    %0 = vector.load %arg1[%c0, %c0_0] : memref<64x128xf32, #tpu.memory_space<vmem>>, vector<64x128xf32>
    %c0_1 = arith.constant 0 : index
    %c0_2 = arith.constant 0 : index
    %1 = vector.load %arg3[%c0_1, %c0_2] : memref<64x128xf32, #tpu.memory_space<vmem>>, vector<64x128xf32>
    %c0_3 = arith.constant 0 : index
    %c0_4 = arith.constant 0 : index
    %2 = vector.load %arg2[%c0_3, %c0_4] : memref<1x128xf32, #tpu.memory_space<vmem>>, vector<1x128xf32>
    %3 = vector.shape_cast %2 : vector<1x128xf32> to vector<1x128xf32>
    %4 = vector.broadcast %3 : vector<1x128xf32> to vector<4x128xf32>
    %c0_5 = arith.constant 0 : index
    %c0_6 = arith.constant 0 : index
    %5 = vector.load %arg4[%c0_5, %c0_6] : memref<1x128xf32, #tpu.memory_space<vmem>>, vector<1x128xf32>
    %6 = vector.shape_cast %5 : vector<1x128xf32> to vector<1x128xf32>
    %7 = vector.broadcast %6 : vector<1x128xf32> to vector<4x128xf32>
    %cst = arith.constant 0.000000e+00 : f32
    %8 = vector.broadcast %cst : f32 to vector<4x32xf32>
    %c0_i32 = arith.constant 0 : i32
    %9 = arith.index_cast %c0_i32 : i32 to index
    %c0_7 = arith.constant 0 : index
    %c0_8 = arith.constant 0 : index
    %10 = vector.load %arg0[%9, %c0_7, %c0_8] : memref<8x4x32xf32, #tpu.memory_space<vmem>>, vector<1x4x32xf32>
    %11 = vector.shape_cast %10 : vector<1x4x32xf32> to vector<4x32xf32>
    %12 = tpu.concatenate %11, %8 in 1 : vector<4x32xf32>, vector<4x32xf32> -> vector<4x64xf32>
    %cst_9 = arith.constant dense<0.000000e+00> : vector<4x128xf32>
    %13 = tpu.matmul %12, %0, %cst_9 {dimension_numbers = #tpu.dot_dimension_numbers<[1], [0], [0], [1], [0, 0, 1, 1], [], []>} : vector<4x64xf32>, vector<64x128xf32>, vector<4x128xf32> -> vector<4x128xf32>
    %14 = arith.addf %13, %4 : vector<4x128xf32>
    %15 = vector.extract_strided_slice %14 {offsets = [0, 0], sizes = [4, 32], strides = [1, 1]} : vector<4x128xf32> to vector<4x32xf32>
    %16 = arith.negf %15 : vector<4x32xf32>
    %17 = math.exp %16 : vector<4x32xf32>
    %cst_10 = arith.constant 1.000000e+00 : f32
    %18 = vector.broadcast %cst_10 : f32 to vector<4x32xf32>
    %19 = arith.addf %18, %17 : vector<4x32xf32>
    %20 = arith.divf %18, %19 : vector<4x32xf32>
    %21 = vector.extract_strided_slice %14 {offsets = [0, 32], sizes = [4, 32], strides = [1, 1]} : vector<4x128xf32> to vector<4x32xf32>
    %22 = arith.negf %21 : vector<4x32xf32>
    %23 = math.exp %22 : vector<4x32xf32>
    %cst_11 = arith.constant 1.000000e+00 : f32
    %24 = vector.broadcast %cst_11 : f32 to vector<4x32xf32>
    %25 = arith.addf %24, %23 : vector<4x32xf32>
    %26 = arith.divf %24, %25 : vector<4x32xf32>
    %27 = vector.extract_strided_slice %14 {offsets = [0, 64], sizes = [4, 32], strides = [1, 1]} : vector<4x128xf32> to vector<4x32xf32>
    %28 = math.tanh %27 : vector<4x32xf32>
    %29 = vector.extract_strided_slice %14 {offsets = [0, 96], sizes = [4, 32], strides = [1, 1]} : vector<4x128xf32> to vector<4x32xf32>
    %30 = arith.negf %29 : vector<4x32xf32>
    %31 = math.exp %30 : vector<4x32xf32>
    %cst_12 = arith.constant 1.000000e+00 : f32
    %32 = vector.broadcast %cst_12 : f32 to vector<4x32xf32>
    %33 = arith.addf %32, %31 : vector<4x32xf32>
    %34 = arith.divf %32, %33 : vector<4x32xf32>
    %35 = arith.mulf %26, %8 : vector<4x32xf32>
    %36 = arith.mulf %20, %28 : vector<4x32xf32>
    %37 = arith.addf %35, %36 : vector<4x32xf32>
    %38 = math.tanh %37 : vector<4x32xf32>
    %39 = arith.mulf %34, %38 : vector<4x32xf32>
    %40 = tpu.concatenate %39, %8 in 1 : vector<4x32xf32>, vector<4x32xf32> -> vector<4x64xf32>
    %cst_13 = arith.constant dense<0.000000e+00> : vector<4x128xf32>
    %41 = tpu.matmul %40, %1, %cst_13 {dimension_numbers = #tpu.dot_dimension_numbers<[1], [0], [0], [1], [0, 0, 1, 1], [], []>} : vector<4x64xf32>, vector<64x128xf32>, vector<4x128xf32> -> vector<4x128xf32>
    %42 = arith.addf %41, %7 : vector<4x128xf32>
    %43 = vector.extract_strided_slice %42 {offsets = [0, 0], sizes = [4, 32], strides = [1, 1]} : vector<4x128xf32> to vector<4x32xf32>
    %44 = arith.negf %43 : vector<4x32xf32>
    %45 = math.exp %44 : vector<4x32xf32>
    %cst_14 = arith.constant 1.000000e+00 : f32
    %46 = vector.broadcast %cst_14 : f32 to vector<4x32xf32>
    %47 = arith.addf %46, %45 : vector<4x32xf32>
    %48 = arith.divf %46, %47 : vector<4x32xf32>
    %49 = vector.extract_strided_slice %42 {offsets = [0, 32], sizes = [4, 32], strides = [1, 1]} : vector<4x128xf32> to vector<4x32xf32>
    %50 = arith.negf %49 : vector<4x32xf32>
    %51 = math.exp %50 : vector<4x32xf32>
    %cst_15 = arith.constant 1.000000e+00 : f32
    %52 = vector.broadcast %cst_15 : f32 to vector<4x32xf32>
    %53 = arith.addf %52, %51 : vector<4x32xf32>
    %54 = arith.divf %52, %53 : vector<4x32xf32>
    %55 = vector.extract_strided_slice %42 {offsets = [0, 64], sizes = [4, 32], strides = [1, 1]} : vector<4x128xf32> to vector<4x32xf32>
    %56 = math.tanh %55 : vector<4x32xf32>
    %57 = vector.extract_strided_slice %42 {offsets = [0, 96], sizes = [4, 32], strides = [1, 1]} : vector<4x128xf32> to vector<4x32xf32>
    %58 = arith.negf %57 : vector<4x32xf32>
    %59 = math.exp %58 : vector<4x32xf32>
    %cst_16 = arith.constant 1.000000e+00 : f32
    %60 = vector.broadcast %cst_16 : f32 to vector<4x32xf32>
    %61 = arith.addf %60, %59 : vector<4x32xf32>
    %62 = arith.divf %60, %61 : vector<4x32xf32>
    %63 = arith.mulf %54, %8 : vector<4x32xf32>
    %64 = arith.mulf %48, %56 : vector<4x32xf32>
    %65 = arith.addf %63, %64 : vector<4x32xf32>
    %66 = math.tanh %65 : vector<4x32xf32>
    %67 = arith.mulf %62, %66 : vector<4x32xf32>
    %c1_i32 = arith.constant 1 : i32
    %68 = arith.index_cast %c1_i32 : i32 to index
    %c0_17 = arith.constant 0 : index
    %c0_18 = arith.constant 0 : index
    %69 = vector.load %arg0[%68, %c0_17, %c0_18] : memref<8x4x32xf32, #tpu.memory_space<vmem>>, vector<1x4x32xf32>
    %70 = vector.shape_cast %69 : vector<1x4x32xf32> to vector<4x32xf32>
    %71 = tpu.concatenate %70, %39 in 1 : vector<4x32xf32>, vector<4x32xf32> -> vector<4x64xf32>
    %cst_19 = arith.constant dense<0.000000e+00> : vector<4x128xf32>
    %72 = tpu.matmul %71, %0, %cst_19 {dimension_numbers = #tpu.dot_dimension_numbers<[1], [0], [0], [1], [0, 0, 1, 1], [], []>} : vector<4x64xf32>, vector<64x128xf32>, vector<4x128xf32> -> vector<4x128xf32>
    %73 = arith.addf %72, %4 : vector<4x128xf32>
    %74 = vector.extract_strided_slice %73 {offsets = [0, 0], sizes = [4, 32], strides = [1, 1]} : vector<4x128xf32> to vector<4x32xf32>
    %75 = arith.negf %74 : vector<4x32xf32>
    %76 = math.exp %75 : vector<4x32xf32>
    %cst_20 = arith.constant 1.000000e+00 : f32
    %77 = vector.broadcast %cst_20 : f32 to vector<4x32xf32>
    %78 = arith.addf %77, %76 : vector<4x32xf32>
    %79 = arith.divf %77, %78 : vector<4x32xf32>
    %80 = vector.extract_strided_slice %73 {offsets = [0, 32], sizes = [4, 32], strides = [1, 1]} : vector<4x128xf32> to vector<4x32xf32>
    %81 = arith.negf %80 : vector<4x32xf32>
    %82 = math.exp %81 : vector<4x32xf32>
    %cst_21 = arith.constant 1.000000e+00 : f32
    %83 = vector.broadcast %cst_21 : f32 to vector<4x32xf32>
    %84 = arith.addf %83, %82 : vector<4x32xf32>
    %85 = arith.divf %83, %84 : vector<4x32xf32>
    %86 = vector.extract_strided_slice %73 {offsets = [0, 64], sizes = [4, 32], strides = [1, 1]} : vector<4x128xf32> to vector<4x32xf32>
    %87 = math.tanh %86 : vector<4x32xf32>
    %88 = vector.extract_strided_slice %73 {offsets = [0, 96], sizes = [4, 32], strides = [1, 1]} : vector<4x128xf32> to vector<4x32xf32>
    %89 = arith.negf %88 : vector<4x32xf32>
    %90 = math.exp %89 : vector<4x32xf32>
    %cst_22 = arith.constant 1.000000e+00 : f32
    %91 = vector.broadcast %cst_22 : f32 to vector<4x32xf32>
    %92 = arith.addf %91, %90 : vector<4x32xf32>
    %93 = arith.divf %91, %92 : vector<4x32xf32>
    %94 = arith.mulf %85, %37 : vector<4x32xf32>
    %95 = arith.mulf %79, %87 : vector<4x32xf32>
    %96 = arith.addf %94, %95 : vector<4x32xf32>
    %97 = math.tanh %96 : vector<4x32xf32>
    %98 = arith.mulf %93, %97 : vector<4x32xf32>
    %99 = tpu.concatenate %98, %67 in 1 : vector<4x32xf32>, vector<4x32xf32> -> vector<4x64xf32>
    %cst_23 = arith.constant dense<0.000000e+00> : vector<4x128xf32>
    %100 = tpu.matmul %99, %1, %cst_23 {dimension_numbers = #tpu.dot_dimension_numbers<[1], [0], [0], [1], [0, 0, 1, 1], [], []>} : vector<4x64xf32>, vector<64x128xf32>, vector<4x128xf32> -> vector<4x128xf32>
    %101 = arith.addf %100, %7 : vector<4x128xf32>
    %102 = vector.extract_strided_slice %101 {offsets = [0, 0], sizes = [4, 32], strides = [1, 1]} : vector<4x128xf32> to vector<4x32xf32>
    %103 = arith.negf %102 : vector<4x32xf32>
    %104 = math.exp %103 : vector<4x32xf32>
    %cst_24 = arith.constant 1.000000e+00 : f32
    %105 = vector.broadcast %cst_24 : f32 to vector<4x32xf32>
    %106 = arith.addf %105, %104 : vector<4x32xf32>
    %107 = arith.divf %105, %106 : vector<4x32xf32>
    %108 = vector.extract_strided_slice %101 {offsets = [0, 32], sizes = [4, 32], strides = [1, 1]} : vector<4x128xf32> to vector<4x32xf32>
    %109 = arith.negf %108 : vector<4x32xf32>
    %110 = math.exp %109 : vector<4x32xf32>
    %cst_25 = arith.constant 1.000000e+00 : f32
    %111 = vector.broadcast %cst_25 : f32 to vector<4x32xf32>
    %112 = arith.addf %111, %110 : vector<4x32xf32>
    %113 = arith.divf %111, %112 : vector<4x32xf32>
    %114 = vector.extract_strided_slice %101 {offsets = [0, 64], sizes = [4, 32], strides = [1, 1]} : vector<4x128xf32> to vector<4x32xf32>
    %115 = math.tanh %114 : vector<4x32xf32>
    %116 = vector.extract_strided_slice %101 {offsets = [0, 96], sizes = [4, 32], strides = [1, 1]} : vector<4x128xf32> to vector<4x32xf32>
    %117 = arith.negf %116 : vector<4x32xf32>
    %118 = math.exp %117 : vector<4x32xf32>
    %cst_26 = arith.constant 1.000000e+00 : f32
    %119 = vector.broadcast %cst_26 : f32 to vector<4x32xf32>
    %120 = arith.addf %119, %118 : vector<4x32xf32>
    %121 = arith.divf %119, %120 : vector<4x32xf32>
    %122 = arith.mulf %113, %65 : vector<4x32xf32>
    %123 = arith.mulf %107, %115 : vector<4x32xf32>
    %124 = arith.addf %122, %123 : vector<4x32xf32>
    %125 = math.tanh %124 : vector<4x32xf32>
    %126 = arith.mulf %121, %125 : vector<4x32xf32>
    %c2_i32 = arith.constant 2 : i32
    %127 = arith.index_cast %c2_i32 : i32 to index
    %c0_27 = arith.constant 0 : index
    %c0_28 = arith.constant 0 : index
    %128 = vector.load %arg0[%127, %c0_27, %c0_28] : memref<8x4x32xf32, #tpu.memory_space<vmem>>, vector<1x4x32xf32>
    %129 = vector.shape_cast %128 : vector<1x4x32xf32> to vector<4x32xf32>
    %130 = tpu.concatenate %129, %98 in 1 : vector<4x32xf32>, vector<4x32xf32> -> vector<4x64xf32>
    %cst_29 = arith.constant dense<0.000000e+00> : vector<4x128xf32>
    %131 = tpu.matmul %130, %0, %cst_29 {dimension_numbers = #tpu.dot_dimension_numbers<[1], [0], [0], [1], [0, 0, 1, 1], [], []>} : vector<4x64xf32>, vector<64x128xf32>, vector<4x128xf32> -> vector<4x128xf32>
    %132 = arith.addf %131, %4 : vector<4x128xf32>
    %133 = vector.extract_strided_slice %132 {offsets = [0, 0], sizes = [4, 32], strides = [1, 1]} : vector<4x128xf32> to vector<4x32xf32>
    %134 = arith.negf %133 : vector<4x32xf32>
    %135 = math.exp %134 : vector<4x32xf32>
    %cst_30 = arith.constant 1.000000e+00 : f32
    %136 = vector.broadcast %cst_30 : f32 to vector<4x32xf32>
    %137 = arith.addf %136, %135 : vector<4x32xf32>
    %138 = arith.divf %136, %137 : vector<4x32xf32>
    %139 = vector.extract_strided_slice %132 {offsets = [0, 32], sizes = [4, 32], strides = [1, 1]} : vector<4x128xf32> to vector<4x32xf32>
    %140 = arith.negf %139 : vector<4x32xf32>
    %141 = math.exp %140 : vector<4x32xf32>
    %cst_31 = arith.constant 1.000000e+00 : f32
    %142 = vector.broadcast %cst_31 : f32 to vector<4x32xf32>
    %143 = arith.addf %142, %141 : vector<4x32xf32>
    %144 = arith.divf %142, %143 : vector<4x32xf32>
    %145 = vector.extract_strided_slice %132 {offsets = [0, 64], sizes = [4, 32], strides = [1, 1]} : vector<4x128xf32> to vector<4x32xf32>
    %146 = math.tanh %145 : vector<4x32xf32>
    %147 = vector.extract_strided_slice %132 {offsets = [0, 96], sizes = [4, 32], strides = [1, 1]} : vector<4x128xf32> to vector<4x32xf32>
    %148 = arith.negf %147 : vector<4x32xf32>
    %149 = math.exp %148 : vector<4x32xf32>
    %cst_32 = arith.constant 1.000000e+00 : f32
    %150 = vector.broadcast %cst_32 : f32 to vector<4x32xf32>
    %151 = arith.addf %150, %149 : vector<4x32xf32>
    %152 = arith.divf %150, %151 : vector<4x32xf32>
    %153 = arith.mulf %144, %96 : vector<4x32xf32>
    %154 = arith.mulf %138, %146 : vector<4x32xf32>
    %155 = arith.addf %153, %154 : vector<4x32xf32>
    %156 = math.tanh %155 : vector<4x32xf32>
    %157 = arith.mulf %152, %156 : vector<4x32xf32>
    %158 = tpu.concatenate %157, %126 in 1 : vector<4x32xf32>, vector<4x32xf32> -> vector<4x64xf32>
    %cst_33 = arith.constant dense<0.000000e+00> : vector<4x128xf32>
    %159 = tpu.matmul %158, %1, %cst_33 {dimension_numbers = #tpu.dot_dimension_numbers<[1], [0], [0], [1], [0, 0, 1, 1], [], []>} : vector<4x64xf32>, vector<64x128xf32>, vector<4x128xf32> -> vector<4x128xf32>
    %160 = arith.addf %159, %7 : vector<4x128xf32>
    %161 = vector.extract_strided_slice %160 {offsets = [0, 0], sizes = [4, 32], strides = [1, 1]} : vector<4x128xf32> to vector<4x32xf32>
    %162 = arith.negf %161 : vector<4x32xf32>
    %163 = math.exp %162 : vector<4x32xf32>
    %cst_34 = arith.constant 1.000000e+00 : f32
    %164 = vector.broadcast %cst_34 : f32 to vector<4x32xf32>
    %165 = arith.addf %164, %163 : vector<4x32xf32>
    %166 = arith.divf %164, %165 : vector<4x32xf32>
    %167 = vector.extract_strided_slice %160 {offsets = [0, 32], sizes = [4, 32], strides = [1, 1]} : vector<4x128xf32> to vector<4x32xf32>
    %168 = arith.negf %167 : vector<4x32xf32>
    %169 = math.exp %168 : vector<4x32xf32>
    %cst_35 = arith.constant 1.000000e+00 : f32
    %170 = vector.broadcast %cst_35 : f32 to vector<4x32xf32>
    %171 = arith.addf %170, %169 : vector<4x32xf32>
    %172 = arith.divf %170, %171 : vector<4x32xf32>
    %173 = vector.extract_strided_slice %160 {offsets = [0, 64], sizes = [4, 32], strides = [1, 1]} : vector<4x128xf32> to vector<4x32xf32>
    %174 = math.tanh %173 : vector<4x32xf32>
    %175 = vector.extract_strided_slice %160 {offsets = [0, 96], sizes = [4, 32], strides = [1, 1]} : vector<4x128xf32> to vector<4x32xf32>
    %176 = arith.negf %175 : vector<4x32xf32>
    %177 = math.exp %176 : vector<4x32xf32>
    %cst_36 = arith.constant 1.000000e+00 : f32
    %178 = vector.broadcast %cst_36 : f32 to vector<4x32xf32>
    %179 = arith.addf %178, %177 : vector<4x32xf32>
    %180 = arith.divf %178, %179 : vector<4x32xf32>
    %181 = arith.mulf %172, %124 : vector<4x32xf32>
    %182 = arith.mulf %166, %174 : vector<4x32xf32>
    %183 = arith.addf %181, %182 : vector<4x32xf32>
    %184 = math.tanh %183 : vector<4x32xf32>
    %185 = arith.mulf %180, %184 : vector<4x32xf32>
    %c3_i32 = arith.constant 3 : i32
    %186 = arith.index_cast %c3_i32 : i32 to index
    %c0_37 = arith.constant 0 : index
    %c0_38 = arith.constant 0 : index
    %187 = vector.load %arg0[%186, %c0_37, %c0_38] : memref<8x4x32xf32, #tpu.memory_space<vmem>>, vector<1x4x32xf32>
    %188 = vector.shape_cast %187 : vector<1x4x32xf32> to vector<4x32xf32>
    %189 = tpu.concatenate %188, %157 in 1 : vector<4x32xf32>, vector<4x32xf32> -> vector<4x64xf32>
    %cst_39 = arith.constant dense<0.000000e+00> : vector<4x128xf32>
    %190 = tpu.matmul %189, %0, %cst_39 {dimension_numbers = #tpu.dot_dimension_numbers<[1], [0], [0], [1], [0, 0, 1, 1], [], []>} : vector<4x64xf32>, vector<64x128xf32>, vector<4x128xf32> -> vector<4x128xf32>
    %191 = arith.addf %190, %4 : vector<4x128xf32>
    %192 = vector.extract_strided_slice %191 {offsets = [0, 0], sizes = [4, 32], strides = [1, 1]} : vector<4x128xf32> to vector<4x32xf32>
    %193 = arith.negf %192 : vector<4x32xf32>
    %194 = math.exp %193 : vector<4x32xf32>
    %cst_40 = arith.constant 1.000000e+00 : f32
    %195 = vector.broadcast %cst_40 : f32 to vector<4x32xf32>
    %196 = arith.addf %195, %194 : vector<4x32xf32>
    %197 = arith.divf %195, %196 : vector<4x32xf32>
    %198 = vector.extract_strided_slice %191 {offsets = [0, 32], sizes = [4, 32], strides = [1, 1]} : vector<4x128xf32> to vector<4x32xf32>
    %199 = arith.negf %198 : vector<4x32xf32>
    %200 = math.exp %199 : vector<4x32xf32>
    %cst_41 = arith.constant 1.000000e+00 : f32
    %201 = vector.broadcast %cst_41 : f32 to vector<4x32xf32>
    %202 = arith.addf %201, %200 : vector<4x32xf32>
    %203 = arith.divf %201, %202 : vector<4x32xf32>
    %204 = vector.extract_strided_slice %191 {offsets = [0, 64], sizes = [4, 32], strides = [1, 1]} : vector<4x128xf32> to vector<4x32xf32>
    %205 = math.tanh %204 : vector<4x32xf32>
    %206 = vector.extract_strided_slice %191 {offsets = [0, 96], sizes = [4, 32], strides = [1, 1]} : vector<4x128xf32> to vector<4x32xf32>
    %207 = arith.negf %206 : vector<4x32xf32>
    %208 = math.exp %207 : vector<4x32xf32>
    %cst_42 = arith.constant 1.000000e+00 : f32
    %209 = vector.broadcast %cst_42 : f32 to vector<4x32xf32>
    %210 = arith.addf %209, %208 : vector<4x32xf32>
    %211 = arith.divf %209, %210 : vector<4x32xf32>
    %212 = arith.mulf %203, %155 : vector<4x32xf32>
    %213 = arith.mulf %197, %205 : vector<4x32xf32>
    %214 = arith.addf %212, %213 : vector<4x32xf32>
    %215 = math.tanh %214 : vector<4x32xf32>
    %216 = arith.mulf %211, %215 : vector<4x32xf32>
    %217 = tpu.concatenate %216, %185 in 1 : vector<4x32xf32>, vector<4x32xf32> -> vector<4x64xf32>
    %cst_43 = arith.constant dense<0.000000e+00> : vector<4x128xf32>
    %218 = tpu.matmul %217, %1, %cst_43 {dimension_numbers = #tpu.dot_dimension_numbers<[1], [0], [0], [1], [0, 0, 1, 1], [], []>} : vector<4x64xf32>, vector<64x128xf32>, vector<4x128xf32> -> vector<4x128xf32>
    %219 = arith.addf %218, %7 : vector<4x128xf32>
    %220 = vector.extract_strided_slice %219 {offsets = [0, 0], sizes = [4, 32], strides = [1, 1]} : vector<4x128xf32> to vector<4x32xf32>
    %221 = arith.negf %220 : vector<4x32xf32>
    %222 = math.exp %221 : vector<4x32xf32>
    %cst_44 = arith.constant 1.000000e+00 : f32
    %223 = vector.broadcast %cst_44 : f32 to vector<4x32xf32>
    %224 = arith.addf %223, %222 : vector<4x32xf32>
    %225 = arith.divf %223, %224 : vector<4x32xf32>
    %226 = vector.extract_strided_slice %219 {offsets = [0, 32], sizes = [4, 32], strides = [1, 1]} : vector<4x128xf32> to vector<4x32xf32>
    %227 = arith.negf %226 : vector<4x32xf32>
    %228 = math.exp %227 : vector<4x32xf32>
    %cst_45 = arith.constant 1.000000e+00 : f32
    %229 = vector.broadcast %cst_45 : f32 to vector<4x32xf32>
    %230 = arith.addf %229, %228 : vector<4x32xf32>
    %231 = arith.divf %229, %230 : vector<4x32xf32>
    %232 = vector.extract_strided_slice %219 {offsets = [0, 64], sizes = [4, 32], strides = [1, 1]} : vector<4x128xf32> to vector<4x32xf32>
    %233 = math.tanh %232 : vector<4x32xf32>
    %234 = vector.extract_strided_slice %219 {offsets = [0, 96], sizes = [4, 32], strides = [1, 1]} : vector<4x128xf32> to vector<4x32xf32>
    %235 = arith.negf %234 : vector<4x32xf32>
    %236 = math.exp %235 : vector<4x32xf32>
    %cst_46 = arith.constant 1.000000e+00 : f32
    %237 = vector.broadcast %cst_46 : f32 to vector<4x32xf32>
    %238 = arith.addf %237, %236 : vector<4x32xf32>
    %239 = arith.divf %237, %238 : vector<4x32xf32>
    %240 = arith.mulf %231, %183 : vector<4x32xf32>
    %241 = arith.mulf %225, %233 : vector<4x32xf32>
    %242 = arith.addf %240, %241 : vector<4x32xf32>
    %243 = math.tanh %242 : vector<4x32xf32>
    %244 = arith.mulf %239, %243 : vector<4x32xf32>
    %c4_i32 = arith.constant 4 : i32
    %245 = arith.index_cast %c4_i32 : i32 to index
    %c0_47 = arith.constant 0 : index
    %c0_48 = arith.constant 0 : index
    %246 = vector.load %arg0[%245, %c0_47, %c0_48] : memref<8x4x32xf32, #tpu.memory_space<vmem>>, vector<1x4x32xf32>
    %247 = vector.shape_cast %246 : vector<1x4x32xf32> to vector<4x32xf32>
    %248 = tpu.concatenate %247, %216 in 1 : vector<4x32xf32>, vector<4x32xf32> -> vector<4x64xf32>
    %cst_49 = arith.constant dense<0.000000e+00> : vector<4x128xf32>
    %249 = tpu.matmul %248, %0, %cst_49 {dimension_numbers = #tpu.dot_dimension_numbers<[1], [0], [0], [1], [0, 0, 1, 1], [], []>} : vector<4x64xf32>, vector<64x128xf32>, vector<4x128xf32> -> vector<4x128xf32>
    %250 = arith.addf %249, %4 : vector<4x128xf32>
    %251 = vector.extract_strided_slice %250 {offsets = [0, 0], sizes = [4, 32], strides = [1, 1]} : vector<4x128xf32> to vector<4x32xf32>
    %252 = arith.negf %251 : vector<4x32xf32>
    %253 = math.exp %252 : vector<4x32xf32>
    %cst_50 = arith.constant 1.000000e+00 : f32
    %254 = vector.broadcast %cst_50 : f32 to vector<4x32xf32>
    %255 = arith.addf %254, %253 : vector<4x32xf32>
    %256 = arith.divf %254, %255 : vector<4x32xf32>
    %257 = vector.extract_strided_slice %250 {offsets = [0, 32], sizes = [4, 32], strides = [1, 1]} : vector<4x128xf32> to vector<4x32xf32>
    %258 = arith.negf %257 : vector<4x32xf32>
    %259 = math.exp %258 : vector<4x32xf32>
    %cst_51 = arith.constant 1.000000e+00 : f32
    %260 = vector.broadcast %cst_51 : f32 to vector<4x32xf32>
    %261 = arith.addf %260, %259 : vector<4x32xf32>
    %262 = arith.divf %260, %261 : vector<4x32xf32>
    %263 = vector.extract_strided_slice %250 {offsets = [0, 64], sizes = [4, 32], strides = [1, 1]} : vector<4x128xf32> to vector<4x32xf32>
    %264 = math.tanh %263 : vector<4x32xf32>
    %265 = vector.extract_strided_slice %250 {offsets = [0, 96], sizes = [4, 32], strides = [1, 1]} : vector<4x128xf32> to vector<4x32xf32>
    %266 = arith.negf %265 : vector<4x32xf32>
    %267 = math.exp %266 : vector<4x32xf32>
    %cst_52 = arith.constant 1.000000e+00 : f32
    %268 = vector.broadcast %cst_52 : f32 to vector<4x32xf32>
    %269 = arith.addf %268, %267 : vector<4x32xf32>
    %270 = arith.divf %268, %269 : vector<4x32xf32>
    %271 = arith.mulf %262, %214 : vector<4x32xf32>
    %272 = arith.mulf %256, %264 : vector<4x32xf32>
    %273 = arith.addf %271, %272 : vector<4x32xf32>
    %274 = math.tanh %273 : vector<4x32xf32>
    %275 = arith.mulf %270, %274 : vector<4x32xf32>
    %276 = tpu.concatenate %275, %244 in 1 : vector<4x32xf32>, vector<4x32xf32> -> vector<4x64xf32>
    %cst_53 = arith.constant dense<0.000000e+00> : vector<4x128xf32>
    %277 = tpu.matmul %276, %1, %cst_53 {dimension_numbers = #tpu.dot_dimension_numbers<[1], [0], [0], [1], [0, 0, 1, 1], [], []>} : vector<4x64xf32>, vector<64x128xf32>, vector<4x128xf32> -> vector<4x128xf32>
    %278 = arith.addf %277, %7 : vector<4x128xf32>
    %279 = vector.extract_strided_slice %278 {offsets = [0, 0], sizes = [4, 32], strides = [1, 1]} : vector<4x128xf32> to vector<4x32xf32>
    %280 = arith.negf %279 : vector<4x32xf32>
    %281 = math.exp %280 : vector<4x32xf32>
    %cst_54 = arith.constant 1.000000e+00 : f32
    %282 = vector.broadcast %cst_54 : f32 to vector<4x32xf32>
    %283 = arith.addf %282, %281 : vector<4x32xf32>
    %284 = arith.divf %282, %283 : vector<4x32xf32>
    %285 = vector.extract_strided_slice %278 {offsets = [0, 32], sizes = [4, 32], strides = [1, 1]} : vector<4x128xf32> to vector<4x32xf32>
    %286 = arith.negf %285 : vector<4x32xf32>
    %287 = math.exp %286 : vector<4x32xf32>
    %cst_55 = arith.constant 1.000000e+00 : f32
    %288 = vector.broadcast %cst_55 : f32 to vector<4x32xf32>
    %289 = arith.addf %288, %287 : vector<4x32xf32>
    %290 = arith.divf %288, %289 : vector<4x32xf32>
    %291 = vector.extract_strided_slice %278 {offsets = [0, 64], sizes = [4, 32], strides = [1, 1]} : vector<4x128xf32> to vector<4x32xf32>
    %292 = math.tanh %291 : vector<4x32xf32>
    %293 = vector.extract_strided_slice %278 {offsets = [0, 96], sizes = [4, 32], strides = [1, 1]} : vector<4x128xf32> to vector<4x32xf32>
    %294 = arith.negf %293 : vector<4x32xf32>
    %295 = math.exp %294 : vector<4x32xf32>
    %cst_56 = arith.constant 1.000000e+00 : f32
    %296 = vector.broadcast %cst_56 : f32 to vector<4x32xf32>
    %297 = arith.addf %296, %295 : vector<4x32xf32>
    %298 = arith.divf %296, %297 : vector<4x32xf32>
    %299 = arith.mulf %290, %242 : vector<4x32xf32>
    %300 = arith.mulf %284, %292 : vector<4x32xf32>
    %301 = arith.addf %299, %300 : vector<4x32xf32>
    %302 = math.tanh %301 : vector<4x32xf32>
    %303 = arith.mulf %298, %302 : vector<4x32xf32>
    %c5_i32 = arith.constant 5 : i32
    %304 = arith.index_cast %c5_i32 : i32 to index
    %c0_57 = arith.constant 0 : index
    %c0_58 = arith.constant 0 : index
    %305 = vector.load %arg0[%304, %c0_57, %c0_58] : memref<8x4x32xf32, #tpu.memory_space<vmem>>, vector<1x4x32xf32>
    %306 = vector.shape_cast %305 : vector<1x4x32xf32> to vector<4x32xf32>
    %307 = tpu.concatenate %306, %275 in 1 : vector<4x32xf32>, vector<4x32xf32> -> vector<4x64xf32>
    %cst_59 = arith.constant dense<0.000000e+00> : vector<4x128xf32>
    %308 = tpu.matmul %307, %0, %cst_59 {dimension_numbers = #tpu.dot_dimension_numbers<[1], [0], [0], [1], [0, 0, 1, 1], [], []>} : vector<4x64xf32>, vector<64x128xf32>, vector<4x128xf32> -> vector<4x128xf32>
    %309 = arith.addf %308, %4 : vector<4x128xf32>
    %310 = vector.extract_strided_slice %309 {offsets = [0, 0], sizes = [4, 32], strides = [1, 1]} : vector<4x128xf32> to vector<4x32xf32>
    %311 = arith.negf %310 : vector<4x32xf32>
    %312 = math.exp %311 : vector<4x32xf32>
    %cst_60 = arith.constant 1.000000e+00 : f32
    %313 = vector.broadcast %cst_60 : f32 to vector<4x32xf32>
    %314 = arith.addf %313, %312 : vector<4x32xf32>
    %315 = arith.divf %313, %314 : vector<4x32xf32>
    %316 = vector.extract_strided_slice %309 {offsets = [0, 32], sizes = [4, 32], strides = [1, 1]} : vector<4x128xf32> to vector<4x32xf32>
    %317 = arith.negf %316 : vector<4x32xf32>
    %318 = math.exp %317 : vector<4x32xf32>
    %cst_61 = arith.constant 1.000000e+00 : f32
    %319 = vector.broadcast %cst_61 : f32 to vector<4x32xf32>
    %320 = arith.addf %319, %318 : vector<4x32xf32>
    %321 = arith.divf %319, %320 : vector<4x32xf32>
    %322 = vector.extract_strided_slice %309 {offsets = [0, 64], sizes = [4, 32], strides = [1, 1]} : vector<4x128xf32> to vector<4x32xf32>
    %323 = math.tanh %322 : vector<4x32xf32>
    %324 = vector.extract_strided_slice %309 {offsets = [0, 96], sizes = [4, 32], strides = [1, 1]} : vector<4x128xf32> to vector<4x32xf32>
    %325 = arith.negf %324 : vector<4x32xf32>
    %326 = math.exp %325 : vector<4x32xf32>
    %cst_62 = arith.constant 1.000000e+00 : f32
    %327 = vector.broadcast %cst_62 : f32 to vector<4x32xf32>
    %328 = arith.addf %327, %326 : vector<4x32xf32>
    %329 = arith.divf %327, %328 : vector<4x32xf32>
    %330 = arith.mulf %321, %273 : vector<4x32xf32>
    %331 = arith.mulf %315, %323 : vector<4x32xf32>
    %332 = arith.addf %330, %331 : vector<4x32xf32>
    %333 = math.tanh %332 : vector<4x32xf32>
    %334 = arith.mulf %329, %333 : vector<4x32xf32>
    %335 = tpu.concatenate %334, %303 in 1 : vector<4x32xf32>, vector<4x32xf32> -> vector<4x64xf32>
    %cst_63 = arith.constant dense<0.000000e+00> : vector<4x128xf32>
    %336 = tpu.matmul %335, %1, %cst_63 {dimension_numbers = #tpu.dot_dimension_numbers<[1], [0], [0], [1], [0, 0, 1, 1], [], []>} : vector<4x64xf32>, vector<64x128xf32>, vector<4x128xf32> -> vector<4x128xf32>
    %337 = arith.addf %336, %7 : vector<4x128xf32>
    %338 = vector.extract_strided_slice %337 {offsets = [0, 0], sizes = [4, 32], strides = [1, 1]} : vector<4x128xf32> to vector<4x32xf32>
    %339 = arith.negf %338 : vector<4x32xf32>
    %340 = math.exp %339 : vector<4x32xf32>
    %cst_64 = arith.constant 1.000000e+00 : f32
    %341 = vector.broadcast %cst_64 : f32 to vector<4x32xf32>
    %342 = arith.addf %341, %340 : vector<4x32xf32>
    %343 = arith.divf %341, %342 : vector<4x32xf32>
    %344 = vector.extract_strided_slice %337 {offsets = [0, 32], sizes = [4, 32], strides = [1, 1]} : vector<4x128xf32> to vector<4x32xf32>
    %345 = arith.negf %344 : vector<4x32xf32>
    %346 = math.exp %345 : vector<4x32xf32>
    %cst_65 = arith.constant 1.000000e+00 : f32
    %347 = vector.broadcast %cst_65 : f32 to vector<4x32xf32>
    %348 = arith.addf %347, %346 : vector<4x32xf32>
    %349 = arith.divf %347, %348 : vector<4x32xf32>
    %350 = vector.extract_strided_slice %337 {offsets = [0, 64], sizes = [4, 32], strides = [1, 1]} : vector<4x128xf32> to vector<4x32xf32>
    %351 = math.tanh %350 : vector<4x32xf32>
    %352 = vector.extract_strided_slice %337 {offsets = [0, 96], sizes = [4, 32], strides = [1, 1]} : vector<4x128xf32> to vector<4x32xf32>
    %353 = arith.negf %352 : vector<4x32xf32>
    %354 = math.exp %353 : vector<4x32xf32>
    %cst_66 = arith.constant 1.000000e+00 : f32
    %355 = vector.broadcast %cst_66 : f32 to vector<4x32xf32>
    %356 = arith.addf %355, %354 : vector<4x32xf32>
    %357 = arith.divf %355, %356 : vector<4x32xf32>
    %358 = arith.mulf %349, %301 : vector<4x32xf32>
    %359 = arith.mulf %343, %351 : vector<4x32xf32>
    %360 = arith.addf %358, %359 : vector<4x32xf32>
    %361 = math.tanh %360 : vector<4x32xf32>
    %362 = arith.mulf %357, %361 : vector<4x32xf32>
    %c6_i32 = arith.constant 6 : i32
    %363 = arith.index_cast %c6_i32 : i32 to index
    %c0_67 = arith.constant 0 : index
    %c0_68 = arith.constant 0 : index
    %364 = vector.load %arg0[%363, %c0_67, %c0_68] : memref<8x4x32xf32, #tpu.memory_space<vmem>>, vector<1x4x32xf32>
    %365 = vector.shape_cast %364 : vector<1x4x32xf32> to vector<4x32xf32>
    %366 = tpu.concatenate %365, %334 in 1 : vector<4x32xf32>, vector<4x32xf32> -> vector<4x64xf32>
    %cst_69 = arith.constant dense<0.000000e+00> : vector<4x128xf32>
    %367 = tpu.matmul %366, %0, %cst_69 {dimension_numbers = #tpu.dot_dimension_numbers<[1], [0], [0], [1], [0, 0, 1, 1], [], []>} : vector<4x64xf32>, vector<64x128xf32>, vector<4x128xf32> -> vector<4x128xf32>
    %368 = arith.addf %367, %4 : vector<4x128xf32>
    %369 = vector.extract_strided_slice %368 {offsets = [0, 0], sizes = [4, 32], strides = [1, 1]} : vector<4x128xf32> to vector<4x32xf32>
    %370 = arith.negf %369 : vector<4x32xf32>
    %371 = math.exp %370 : vector<4x32xf32>
    %cst_70 = arith.constant 1.000000e+00 : f32
    %372 = vector.broadcast %cst_70 : f32 to vector<4x32xf32>
    %373 = arith.addf %372, %371 : vector<4x32xf32>
    %374 = arith.divf %372, %373 : vector<4x32xf32>
    %375 = vector.extract_strided_slice %368 {offsets = [0, 32], sizes = [4, 32], strides = [1, 1]} : vector<4x128xf32> to vector<4x32xf32>
    %376 = arith.negf %375 : vector<4x32xf32>
    %377 = math.exp %376 : vector<4x32xf32>
    %cst_71 = arith.constant 1.000000e+00 : f32
    %378 = vector.broadcast %cst_71 : f32 to vector<4x32xf32>
    %379 = arith.addf %378, %377 : vector<4x32xf32>
    %380 = arith.divf %378, %379 : vector<4x32xf32>
    %381 = vector.extract_strided_slice %368 {offsets = [0, 64], sizes = [4, 32], strides = [1, 1]} : vector<4x128xf32> to vector<4x32xf32>
    %382 = math.tanh %381 : vector<4x32xf32>
    %383 = vector.extract_strided_slice %368 {offsets = [0, 96], sizes = [4, 32], strides = [1, 1]} : vector<4x128xf32> to vector<4x32xf32>
    %384 = arith.negf %383 : vector<4x32xf32>
    %385 = math.exp %384 : vector<4x32xf32>
    %cst_72 = arith.constant 1.000000e+00 : f32
    %386 = vector.broadcast %cst_72 : f32 to vector<4x32xf32>
    %387 = arith.addf %386, %385 : vector<4x32xf32>
    %388 = arith.divf %386, %387 : vector<4x32xf32>
    %389 = arith.mulf %380, %332 : vector<4x32xf32>
    %390 = arith.mulf %374, %382 : vector<4x32xf32>
    %391 = arith.addf %389, %390 : vector<4x32xf32>
    %392 = math.tanh %391 : vector<4x32xf32>
    %393 = arith.mulf %388, %392 : vector<4x32xf32>
    %394 = tpu.concatenate %393, %362 in 1 : vector<4x32xf32>, vector<4x32xf32> -> vector<4x64xf32>
    %cst_73 = arith.constant dense<0.000000e+00> : vector<4x128xf32>
    %395 = tpu.matmul %394, %1, %cst_73 {dimension_numbers = #tpu.dot_dimension_numbers<[1], [0], [0], [1], [0, 0, 1, 1], [], []>} : vector<4x64xf32>, vector<64x128xf32>, vector<4x128xf32> -> vector<4x128xf32>
    %396 = arith.addf %395, %7 : vector<4x128xf32>
    %397 = vector.extract_strided_slice %396 {offsets = [0, 0], sizes = [4, 32], strides = [1, 1]} : vector<4x128xf32> to vector<4x32xf32>
    %398 = arith.negf %397 : vector<4x32xf32>
    %399 = math.exp %398 : vector<4x32xf32>
    %cst_74 = arith.constant 1.000000e+00 : f32
    %400 = vector.broadcast %cst_74 : f32 to vector<4x32xf32>
    %401 = arith.addf %400, %399 : vector<4x32xf32>
    %402 = arith.divf %400, %401 : vector<4x32xf32>
    %403 = vector.extract_strided_slice %396 {offsets = [0, 32], sizes = [4, 32], strides = [1, 1]} : vector<4x128xf32> to vector<4x32xf32>
    %404 = arith.negf %403 : vector<4x32xf32>
    %405 = math.exp %404 : vector<4x32xf32>
    %cst_75 = arith.constant 1.000000e+00 : f32
    %406 = vector.broadcast %cst_75 : f32 to vector<4x32xf32>
    %407 = arith.addf %406, %405 : vector<4x32xf32>
    %408 = arith.divf %406, %407 : vector<4x32xf32>
    %409 = vector.extract_strided_slice %396 {offsets = [0, 64], sizes = [4, 32], strides = [1, 1]} : vector<4x128xf32> to vector<4x32xf32>
    %410 = math.tanh %409 : vector<4x32xf32>
    %411 = vector.extract_strided_slice %396 {offsets = [0, 96], sizes = [4, 32], strides = [1, 1]} : vector<4x128xf32> to vector<4x32xf32>
    %412 = arith.negf %411 : vector<4x32xf32>
    %413 = math.exp %412 : vector<4x32xf32>
    %cst_76 = arith.constant 1.000000e+00 : f32
    %414 = vector.broadcast %cst_76 : f32 to vector<4x32xf32>
    %415 = arith.addf %414, %413 : vector<4x32xf32>
    %416 = arith.divf %414, %415 : vector<4x32xf32>
    %417 = arith.mulf %408, %360 : vector<4x32xf32>
    %418 = arith.mulf %402, %410 : vector<4x32xf32>
    %419 = arith.addf %417, %418 : vector<4x32xf32>
    %420 = math.tanh %419 : vector<4x32xf32>
    %421 = arith.mulf %416, %420 : vector<4x32xf32>
    %c7_i32 = arith.constant 7 : i32
    %422 = arith.index_cast %c7_i32 : i32 to index
    %c0_77 = arith.constant 0 : index
    %c0_78 = arith.constant 0 : index
    %423 = vector.load %arg0[%422, %c0_77, %c0_78] : memref<8x4x32xf32, #tpu.memory_space<vmem>>, vector<1x4x32xf32>
    %424 = vector.shape_cast %423 : vector<1x4x32xf32> to vector<4x32xf32>
    %425 = tpu.concatenate %424, %393 in 1 : vector<4x32xf32>, vector<4x32xf32> -> vector<4x64xf32>
    %cst_79 = arith.constant dense<0.000000e+00> : vector<4x128xf32>
    %426 = tpu.matmul %425, %0, %cst_79 {dimension_numbers = #tpu.dot_dimension_numbers<[1], [0], [0], [1], [0, 0, 1, 1], [], []>} : vector<4x64xf32>, vector<64x128xf32>, vector<4x128xf32> -> vector<4x128xf32>
    %427 = arith.addf %426, %4 : vector<4x128xf32>
    %428 = vector.extract_strided_slice %427 {offsets = [0, 0], sizes = [4, 32], strides = [1, 1]} : vector<4x128xf32> to vector<4x32xf32>
    %429 = arith.negf %428 : vector<4x32xf32>
    %430 = math.exp %429 : vector<4x32xf32>
    %cst_80 = arith.constant 1.000000e+00 : f32
    %431 = vector.broadcast %cst_80 : f32 to vector<4x32xf32>
    %432 = arith.addf %431, %430 : vector<4x32xf32>
    %433 = arith.divf %431, %432 : vector<4x32xf32>
    %434 = vector.extract_strided_slice %427 {offsets = [0, 32], sizes = [4, 32], strides = [1, 1]} : vector<4x128xf32> to vector<4x32xf32>
    %435 = arith.negf %434 : vector<4x32xf32>
    %436 = math.exp %435 : vector<4x32xf32>
    %cst_81 = arith.constant 1.000000e+00 : f32
    %437 = vector.broadcast %cst_81 : f32 to vector<4x32xf32>
    %438 = arith.addf %437, %436 : vector<4x32xf32>
    %439 = arith.divf %437, %438 : vector<4x32xf32>
    %440 = vector.extract_strided_slice %427 {offsets = [0, 64], sizes = [4, 32], strides = [1, 1]} : vector<4x128xf32> to vector<4x32xf32>
    %441 = math.tanh %440 : vector<4x32xf32>
    %442 = vector.extract_strided_slice %427 {offsets = [0, 96], sizes = [4, 32], strides = [1, 1]} : vector<4x128xf32> to vector<4x32xf32>
    %443 = arith.negf %442 : vector<4x32xf32>
    %444 = math.exp %443 : vector<4x32xf32>
    %cst_82 = arith.constant 1.000000e+00 : f32
    %445 = vector.broadcast %cst_82 : f32 to vector<4x32xf32>
    %446 = arith.addf %445, %444 : vector<4x32xf32>
    %447 = arith.divf %445, %446 : vector<4x32xf32>
    %448 = arith.mulf %439, %391 : vector<4x32xf32>
    %449 = arith.mulf %433, %441 : vector<4x32xf32>
    %450 = arith.addf %448, %449 : vector<4x32xf32>
    %451 = math.tanh %450 : vector<4x32xf32>
    %452 = arith.mulf %447, %451 : vector<4x32xf32>
    %453 = tpu.concatenate %452, %421 in 1 : vector<4x32xf32>, vector<4x32xf32> -> vector<4x64xf32>
    %cst_83 = arith.constant dense<0.000000e+00> : vector<4x128xf32>
    %454 = tpu.matmul %453, %1, %cst_83 {dimension_numbers = #tpu.dot_dimension_numbers<[1], [0], [0], [1], [0, 0, 1, 1], [], []>} : vector<4x64xf32>, vector<64x128xf32>, vector<4x128xf32> -> vector<4x128xf32>
    %455 = arith.addf %454, %7 : vector<4x128xf32>
    %456 = vector.extract_strided_slice %455 {offsets = [0, 0], sizes = [4, 32], strides = [1, 1]} : vector<4x128xf32> to vector<4x32xf32>
    %457 = arith.negf %456 : vector<4x32xf32>
    %458 = math.exp %457 : vector<4x32xf32>
    %cst_84 = arith.constant 1.000000e+00 : f32
    %459 = vector.broadcast %cst_84 : f32 to vector<4x32xf32>
    %460 = arith.addf %459, %458 : vector<4x32xf32>
    %461 = arith.divf %459, %460 : vector<4x32xf32>
    %462 = vector.extract_strided_slice %455 {offsets = [0, 32], sizes = [4, 32], strides = [1, 1]} : vector<4x128xf32> to vector<4x32xf32>
    %463 = arith.negf %462 : vector<4x32xf32>
    %464 = math.exp %463 : vector<4x32xf32>
    %cst_85 = arith.constant 1.000000e+00 : f32
    %465 = vector.broadcast %cst_85 : f32 to vector<4x32xf32>
    %466 = arith.addf %465, %464 : vector<4x32xf32>
    %467 = arith.divf %465, %466 : vector<4x32xf32>
    %468 = vector.extract_strided_slice %455 {offsets = [0, 64], sizes = [4, 32], strides = [1, 1]} : vector<4x128xf32> to vector<4x32xf32>
    %469 = math.tanh %468 : vector<4x32xf32>
    %470 = vector.extract_strided_slice %455 {offsets = [0, 96], sizes = [4, 32], strides = [1, 1]} : vector<4x128xf32> to vector<4x32xf32>
    %471 = arith.negf %470 : vector<4x32xf32>
    %472 = math.exp %471 : vector<4x32xf32>
    %cst_86 = arith.constant 1.000000e+00 : f32
    %473 = vector.broadcast %cst_86 : f32 to vector<4x32xf32>
    %474 = arith.addf %473, %472 : vector<4x32xf32>
    %475 = arith.divf %473, %474 : vector<4x32xf32>
    %476 = arith.mulf %467, %419 : vector<4x32xf32>
    %477 = arith.mulf %461, %469 : vector<4x32xf32>
    %478 = arith.addf %476, %477 : vector<4x32xf32>
    %479 = math.tanh %478 : vector<4x32xf32>
    %480 = arith.mulf %475, %479 : vector<4x32xf32>
    %c8_i32 = arith.constant 8 : i32
    %481 = vector.extract_strided_slice %480 {offsets = [0, 0], sizes = [2, 32], strides = [1, 1]} : vector<4x32xf32> to vector<2x32xf32>
    %482 = vector.extract_strided_slice %480 {offsets = [2, 0], sizes = [2, 32], strides = [1, 1]} : vector<4x32xf32> to vector<2x32xf32>
    %c0_87 = arith.constant 0 : index
    %c0_88 = arith.constant 0 : index
    %483 = vector.load %arg5[%c0_87, %c0_88] : memref<32x32xf32, #tpu.memory_space<vmem>>, vector<32x32xf32>
    %cst_89 = arith.constant dense<0.000000e+00> : vector<2x32xf32>
    %484 = tpu.matmul %481, %483, %cst_89 {dimension_numbers = #tpu.dot_dimension_numbers<[1], [0], [0], [1], [0, 0, 1, 1], [], []>} : vector<2x32xf32>, vector<32x32xf32>, vector<2x32xf32> -> vector<2x32xf32>
    %c0_90 = arith.constant 0 : index
    %c0_91 = arith.constant 0 : index
    %485 = vector.load %arg6[%c0_90, %c0_91] : memref<32x32xf32, #tpu.memory_space<vmem>>, vector<32x32xf32>
    %cst_92 = arith.constant dense<0.000000e+00> : vector<2x32xf32>
    %486 = tpu.matmul %482, %485, %cst_92 {dimension_numbers = #tpu.dot_dimension_numbers<[1], [0], [0], [1], [0, 0, 1, 1], [], []>} : vector<2x32xf32>, vector<32x32xf32>, vector<2x32xf32> -> vector<2x32xf32>
    %487 = arith.addf %484, %486 : vector<2x32xf32>
    %c0_93 = arith.constant 0 : index
    %c0_94 = arith.constant 0 : index
    %488 = vector.load %arg7[%c0_93, %c0_94] : memref<1x32xf32, #tpu.memory_space<vmem>>, vector<1x32xf32>
    %489 = vector.broadcast %488 : vector<1x32xf32> to vector<2x32xf32>
    %490 = arith.addf %487, %489 : vector<2x32xf32>
    %cst_95 = arith.constant 0.000000e+00 : f32
    %491 = vector.broadcast %cst_95 : f32 to vector<2x32xf32>
    %492 = arith.maximumf %490, %491 : vector<2x32xf32>
    %c0_96 = arith.constant 0 : index
    %c0_97 = arith.constant 0 : index
    %493 = vector.load %arg8[%c0_96, %c0_97] : memref<32x1xf32, #tpu.memory_space<vmem>>, vector<32x1xf32>
    %cst_98 = arith.constant dense<0.000000e+00> : vector<2x1xf32>
    %494 = tpu.matmul %492, %493, %cst_98 {dimension_numbers = #tpu.dot_dimension_numbers<[1], [0], [0], [1], [0, 0, 1, 1], [], []>} : vector<2x32xf32>, vector<32x1xf32>, vector<2x1xf32> -> vector<2x1xf32>
    %c0_99 = arith.constant 0 : index
    %c0_100 = arith.constant 0 : index
    %495 = vector.load %arg9[%c0_99, %c0_100] : memref<1x1xf32, #tpu.memory_space<vmem>>, vector<1x1xf32>
    %496 = vector.broadcast %495 : vector<1x1xf32> to vector<2x1xf32>
    %497 = arith.addf %494, %496 : vector<2x1xf32>
    %498 = vector.shape_cast %497 : vector<2x1xf32> to vector<2x1xf32>
    %499 = vector.broadcast %498 : vector<2x1xf32> to vector<2x128xf32>
    %c0_101 = arith.constant 0 : index
    %c0_102 = arith.constant 0 : index
    %500 = vector.load %arg10[%c0_101, %c0_102] : memref<2x128xf32, #tpu.memory_space<vmem>>, vector<2x128xf32>
    tpu.vector_store %arg10[%c0_101, %c0_102], %499 {strides = array<i32>} : memref<2x128xf32, #tpu.memory_space<vmem>>, vector<2x128xf32>,
    return
  }
}

</mosaic_0001>

<llo_original>
// kernel: two_head_lstm_forward.1
$region0: #{two_head_lstm_forward.1}
  #allocation0 [shape = 'u32[]', space=smem, size = 0x4, offset = 0x4, fixed_abs, tag = 'smem constant byte address 0x4 - core index']
  #allocation1 [shape = 'u32[72,128]{1,0:T(1,128)}', space=vmem, size = 0x9000, scoped, tag = 'internal scratch']
  #allocation2 [shape = 'f32[1,1]{1,0:T(1,128)S(1)}', space=vmem, size = 0x200, scoped, tag = 'scoped memory for two_head_lstm_forward.1']
  %s0 = inlined_call_operand.vmem [shape: f32[8,4,32], index: 0, kind: input, shape index: {}]
  %s1 = inlined_call_operand.vmem [shape: f32[64,128], index: 1, kind: input, shape index: {}]
  %s2 = inlined_call_operand.vmem [shape: f32[1,128], index: 2, kind: input, shape index: {}]
  %s3 = inlined_call_operand.vmem [shape: f32[64,128], index: 3, kind: input, shape index: {}]
  %s4 = inlined_call_operand.vmem [shape: f32[1,128], index: 4, kind: input, shape index: {}]
  %s5 = inlined_call_operand.vmem [shape: f32[32,32], index: 5, kind: input, shape index: {}]
  %s6 = inlined_call_operand.vmem [shape: f32[32,32], index: 6, kind: input, shape index: {}]
  %s7 = inlined_call_operand.vmem [shape: f32[1,32], index: 7, kind: input, shape index: {}]
  %s8 = inlined_call_operand.vmem [shape: f32[32,1], index: 8, kind: input, shape index: {}]
  %s9 = inlined_call_operand.<no memory space> [shape: f32[1,1], index: 9, kind: input, shape index: {}]
  %s10 = inlined_call_operand.vmem [shape: f32[2,128], index: 10, kind: output, shape index: {}]
  %s11 = sld [smem:[#allocation0]]
  $region50: #{two_head_lstm_forward.1} parent=0
    _
  %s13 = ssub.s32 1, %s11
  %s14 = scalar_select 0, %s13, %s11
  %v15 = vstv %s9
  %16 = vst [vmem:[#allocation2] sm:$0x1] %v15
  // Predicated region
  $region2: #{two_head_lstm_forward.1} parent=0 // pred_check
    _
  $region3: #{two_head_lstm_forward.1} parent=0 // pred_check_branch
    %18 = sbr.rel (0) target = $region5
  $region4: #{two_head_lstm_forward.1} parent=0 // pred_region
    _
  $region5: #{two_head_lstm_forward.1} parent=0 // pred_fallthru
    _
  // Predicated region
  $region6: #{two_head_lstm_forward.1} parent=0 // pred_check
    _
  $region7: #{two_head_lstm_forward.1} parent=0 // pred_check_branch
    %20 = sbr.rel (0) target = $region9
  $region8: #{two_head_lstm_forward.1} parent=0 // pred_region
    _
  $region9: #{two_head_lstm_forward.1} parent=0 // pred_fallthru
    _
  // Predicated region
  $region10: #{two_head_lstm_forward.1} parent=0 // pred_check
    _
  $region11: #{two_head_lstm_forward.1} parent=0 // pred_check_branch
    %22 = sbr.rel (0) target = $region13
  $region12: #{two_head_lstm_forward.1} parent=0 // pred_region
    _
  $region13: #{two_head_lstm_forward.1} parent=0 // pred_fallthru
    _
  // Predicated region
  $region14: #{two_head_lstm_forward.1} parent=0 // pred_check
    _
  $region15: #{two_head_lstm_forward.1} parent=0 // pred_check_branch
    %24 = sbr.rel (0) target = $region17
  $region16: #{two_head_lstm_forward.1} parent=0 // pred_region
    _
  $region17: #{two_head_lstm_forward.1} parent=0 // pred_fallthru
    _
  // Predicated region
  $region18: #{two_head_lstm_forward.1} parent=0 // pred_check
    _
  $region19: #{two_head_lstm_forward.1} parent=0 // pred_check_branch
    %26 = sbr.rel (0) target = $region21
  $region20: #{two_head_lstm_forward.1} parent=0 // pred_region
    _
  $region21: #{two_head_lstm_forward.1} parent=0 // pred_fallthru
    _
  // Predicated region
  $region22: #{two_head_lstm_forward.1} parent=0 // pred_check
    _
  $region23: #{two_head_lstm_forward.1} parent=0 // pred_check_branch
    %28 = sbr.rel (0) target = $region25
  $region24: #{two_head_lstm_forward.1} parent=0 // pred_region
    _
  $region25: #{two_head_lstm_forward.1} parent=0 // pred_fallthru
    _
  // Predicated region
  $region26: #{two_head_lstm_forward.1} parent=0 // pred_check
    _
  $region27: #{two_head_lstm_forward.1} parent=0 // pred_check_branch
    %30 = sbr.rel (0) target = $region29
  $region28: #{two_head_lstm_forward.1} parent=0 // pred_region
    _
  $region29: #{two_head_lstm_forward.1} parent=0 // pred_fallthru
    _
  // Predicated region
  $region30: #{two_head_lstm_forward.1} parent=0 // pred_check
    _
  $region31: #{two_head_lstm_forward.1} parent=0 // pred_check_branch
    %32 = sbr.rel (0) target = $region33
  $region32: #{two_head_lstm_forward.1} parent=0 // pred_region
    _
  $region33: #{two_head_lstm_forward.1} parent=0 // pred_fallthru
    _
  // Predicated region
  $region34: #{two_head_lstm_forward.1} parent=0 // pred_check
    _
  $region35: #{two_head_lstm_forward.1} parent=0 // pred_check_branch
    %34 = sbr.rel (0) target = $region37
  $region36: #{two_head_lstm_forward.1} parent=0 // pred_region
    _
  $region37: #{two_head_lstm_forward.1} parent=0 // pred_fallthru
    _
  // Predicated region
  $region38: #{two_head_lstm_forward.1} parent=0 // pred_check
    _
  $region39: #{two_head_lstm_forward.1} parent=0 // pred_check_branch
    %36 = sbr.rel (0) target = $region41
  $region40: #{two_head_lstm_forward.1} parent=0 // pred_region
    _
  $region41: #{two_head_lstm_forward.1} parent=0 // pred_fallthru
    _
  %v37 = vld [vmem:[%s1] sm:$0xff]
  %v38 = vld [vmem:[%s1 + $0x8] sm:$0xff]
  %v39 = vld [vmem:[%s1 + $0x10] sm:$0xff]
  %v40 = vld [vmem:[%s1 + $0x18] sm:$0xff]
  %v41 = vld [vmem:[%s1 + $0x20] sm:$0xff]
  %v42 = vld [vmem:[%s1 + $0x28] sm:$0xff]
  %v43 = vld [vmem:[%s1 + $0x30] sm:$0xff]
  %v44 = vld [vmem:[%s1 + $0x38] sm:$0xff]
  %v45 = vld [vmem:[%s3] sm:$0xff]
  %v46 = vld [vmem:[%s3 + $0x8] sm:$0xff]
  %v47 = vld [vmem:[%s3 + $0x10] sm:$0xff]
  %v48 = vld [vmem:[%s3 + $0x18] sm:$0xff]
  %v49 = vld [vmem:[%s3 + $0x20] sm:$0xff]
  %v50 = vld [vmem:[%s3 + $0x28] sm:$0xff]
  %v51 = vld [vmem:[%s3 + $0x30] sm:$0xff]
  %v52 = vld [vmem:[%s3 + $0x38] sm:$0xff]
  %v53 = vld [vmem:[%s2] sm:$0x1]
  %v55 = vperm.slane %v53, 0
  %v57 = vld [vmem:[%s4] sm:$0x1]
  %v59 = vperm.slane %v57, 0
  %v61 = vld [vmem:[%s0] sm:$0xf]
  %vm62 = vcmask 261120
  %v63 = vsel %vm62, %v61, 0.0
  %vm64 = vcmask 523264
  %v66 = vsel %vm64, %v63, 0
  %68 = vmatpush.msra.mxu0 0.0
  %69 = vmatpush.msra.mxu0 0.0
  %70 = vmatpush.msra.mxu0 0.0
  %71 = vmatpush.msra.mxu0 0.0
  %72 = vmatpush.msra.mxu0 0.0
  %73 = vmatpush.msra.mxu0 0.0
  %74 = vmatpush.msra.mxu0 0.0
  %75 = vmatpush.msra.mxu0 0.0
  %76 = vmatpush.msra.mxu0 %v44
  %77 = vmatpush.msra.mxu0 %v43
  %78 = vmatpush.msra.mxu0 %v42
  %79 = vmatpush.msra.mxu0 %v41
  %80 = vmatpush.msra.mxu0 %v40
  %81 = vmatpush.msra.mxu0 %v39
  %82 = vmatpush.msra.mxu0 %v38
  %83 = vmatpush.msra.mxu0 %v37
  %84 = vmatmul.f32.gmra.mxu0 %v66
  %v85 = vpop.f32.mrf.mxu0
  %v86 = vadd.f32 %v55, %v85
  %87 = vdwg.mxu0
  %v88 = vxor.u32 %v86, 2147483648
  %v89 = vmul.f32 %v88, 1.442695
  %v90 = vpow.pop %v89
  %v91 = vadd.f32 %v90, 1.0
  %v92 = vrcp.pop %v91
  %v93 = vmul.f32 %v91, %v92
  %v94 = vsub.f32 1.0, %v93
  %v95 = vmul.f32 %v92, %v94
  %v96 = vadd.f32 %v92, %v95
  %vm97 = vweird.f32 %v91
  %vm98 = vweird.f32 %v92
  %vm99 = vmor %vm97, %vm98
  %v100 = vsel %vm99, %v92, %v96
  %v101 = vand.u32 2147483647, %v91
  %vm102 = vcmp.eq.f32.partialorder %v101, 8.507059e+37
  %v103 = vand.u32 %v91, 2147483648
  %v104 = vor.u32 1.1754944e-38, %v103
  %v105 = vsel %vm102, %v104, %v100
  %v106 = vmul.f32 1.0, %v105
  %v107 = vtanh.pop %v86
  %v108 = vmul.f32 %v106, 0.0
  %110 = vrot.lane.b32.xlu0 %v107, 64
  %v111 = vpop.permute.xlu0 %110
  %v113 = vmul.f32 %v106, %v111
  %115 = vrot.lane.b32.xlu0 %v113, 32
  %v116 = vpop.permute.xlu0 %115
  %v118 = vadd.f32 %v108, %v116
  %v119 = vtanh.pop %v118
  %121 = vrot.lane.b32.xlu0 %v119, 64
  %v122 = vpop.permute.xlu0 %121
  %v124 = vmul.f32 %v106, %v122
  %126 = vrot.lane.b32.xlu0 %v124, 32
  %v127 = vpop.permute.xlu0 %126
  %v129 = vsel %vm62, %v127, 0.0
  %v131 = vsel %vm64, %v129, 0
  %133 = vmatpush.msra.mxu0 0.0
  %134 = vmatpush.msra.mxu0 0.0
  %135 = vmatpush.msra.mxu0 0.0
  %136 = vmatpush.msra.mxu0 0.0
  %137 = vmatpush.msra.mxu0 0.0
  %138 = vmatpush.msra.mxu0 0.0
  %139 = vmatpush.msra.mxu0 0.0
  %140 = vmatpush.msra.mxu0 0.0
  %141 = vmatpush.msra.mxu0 %v52
  %142 = vmatpush.msra.mxu0 %v51
  %143 = vmatpush.msra.mxu0 %v50
  %144 = vmatpush.msra.mxu0 %v49
  %145 = vmatpush.msra.mxu0 %v48
  %146 = vmatpush.msra.mxu0 %v47
  %147 = vmatpush.msra.mxu0 %v46
  %148 = vmatpush.msra.mxu0 %v45
  %149 = vmatmul.f32.gmra.mxu0 %v131
  %v150 = vpop.f32.mrf.mxu0
  %v151 = vadd.f32 %v59, %v150
  %152 = vdwg.mxu0
  %v153 = vxor.u32 %v151, 2147483648
  %v154 = vmul.f32 %v153, 1.442695
  %v155 = vpow.pop %v154
  %v156 = vadd.f32 %v155, 1.0
  %v157 = vrcp.pop %v156
  %v158 = vmul.f32 %v156, %v157
  %v159 = vsub.f32 1.0, %v158
  %v160 = vmul.f32 %v157, %v159
  %v161 = vadd.f32 %v157, %v160
  %vm162 = vweird.f32 %v156
  %vm163 = vweird.f32 %v157
  %vm164 = vmor %vm162, %vm163
  %v165 = vsel %vm164, %v157, %v161
  %v166 = vand.u32 2147483647, %v156
  %vm167 = vcmp.eq.f32.partialorder %v166, 8.507059e+37
  %v168 = vand.u32 %v156, 2147483648
  %v169 = vor.u32 1.1754944e-38, %v168
  %v170 = vsel %vm167, %v169, %v165
  %v171 = vmul.f32 1.0, %v170
  %v172 = vtanh.pop %v151
  %v173 = vmul.f32 %v171, 0.0
  %175 = vrot.lane.b32.xlu0 %v172, 64
  %v176 = vpop.permute.xlu0 %175
  %v178 = vmul.f32 %v171, %v176
  %180 = vrot.lane.b32.xlu0 %v178, 32
  %v181 = vpop.permute.xlu0 %180
  %v183 = vadd.f32 %v173, %v181
  %v184 = vtanh.pop %v183
  %186 = vrot.lane.b32.xlu0 %v184, 64
  %v187 = vpop.permute.xlu0 %186
  %v189 = vmul.f32 %v171, %v187
  %s190 = scalar_lea.vmem %s0, 4
  %v191 = vld [vmem:[%s190] sm:$0xf]
  %192 = vrot.lane.b32.xlu0 %v124, 64
  %v193 = vpop.permute.xlu0 %192
  %v195 = vsel %vm62, %v191, %v193
  %v197 = vsel %vm64, %v195, 0
  %199 = vmatpush.msra.mxu0 0.0
  %200 = vmatpush.msra.mxu0 0.0
  %201 = vmatpush.msra.mxu0 0.0
  %202 = vmatpush.msra.mxu0 0.0
  %203 = vmatpush.msra.mxu0 0.0
  %204 = vmatpush.msra.mxu0 0.0
  %205 = vmatpush.msra.mxu0 0.0
  %206 = vmatpush.msra.mxu0 0.0
  %207 = vmatpush.msra.mxu0 %v44
  %208 = vmatpush.msra.mxu0 %v43
  %209 = vmatpush.msra.mxu0 %v42
  %210 = vmatpush.msra.mxu0 %v41
  %211 = vmatpush.msra.mxu0 %v40
  %212 = vmatpush.msra.mxu0 %v39
  %213 = vmatpush.msra.mxu0 %v38
  %214 = vmatpush.msra.mxu0 %v37
  %215 = vmatmul.f32.gmra.mxu0 %v197
  %v216 = vpop.f32.mrf.mxu0
  %v217 = vadd.f32 %v55, %v216
  %218 = vdwg.mxu0
  %v219 = vxor.u32 %v217, 2147483648
  %v220 = vmul.f32 %v219, 1.442695
  %v221 = vpow.pop %v220
  %v222 = vadd.f32 %v221, 1.0
  %v223 = vrcp.pop %v222
  %v224 = vmul.f32 %v222, %v223
  %v225 = vsub.f32 1.0, %v224
  %v226 = vmul.f32 %v223, %v225
  %v227 = vadd.f32 %v223, %v226
  %vm228 = vweird.f32 %v222
  %vm229 = vweird.f32 %v223
  %vm230 = vmor %vm228, %vm229
  %v231 = vsel %vm230, %v223, %v227
  %v232 = vand.u32 2147483647, %v222
  %vm233 = vcmp.eq.f32.partialorder %v232, 8.507059e+37
  %v234 = vand.u32 %v222, 2147483648
  %v235 = vor.u32 1.1754944e-38, %v234
  %v236 = vsel %vm233, %v235, %v231
  %v237 = vmul.f32 1.0, %v236
  %v238 = vtanh.pop %v217
  %v239 = vmul.f32 %v237, %v118
  %241 = vrot.lane.b32.xlu0 %v238, 64
  %v242 = vpop.permute.xlu0 %241
  %v244 = vmul.f32 %v237, %v242
  %246 = vrot.lane.b32.xlu0 %v244, 32
  %v247 = vpop.permute.xlu0 %246
  %v249 = vadd.f32 %v239, %v247
  %v250 = vtanh.pop %v249
  %252 = vrot.lane.b32.xlu0 %v250, 64
  %v253 = vpop.permute.xlu0 %252
  %v255 = vmul.f32 %v237, %v253
  %257 = vrot.lane.b32.xlu0 %v255, 32
  %v258 = vpop.permute.xlu0 %257
  %261 = vrot.lane.b32.xlu0 %v189, 64
  %v262 = vpop.permute.xlu0 %261
  %v264 = vsel %vm62, %v258, %v262
  %v266 = vsel %vm64, %v264, 0
  %268 = vmatpush.msra.mxu0 0.0
  %269 = vmatpush.msra.mxu0 0.0
  %270 = vmatpush.msra.mxu0 0.0
  %271 = vmatpush.msra.mxu0 0.0
  %272 = vmatpush.msra.mxu0 0.0
  %273 = vmatpush.msra.mxu0 0.0
  %274 = vmatpush.msra.mxu0 0.0
  %275 = vmatpush.msra.mxu0 0.0
  %276 = vmatpush.msra.mxu0 %v52
  %277 = vmatpush.msra.mxu0 %v51
  %278 = vmatpush.msra.mxu0 %v50
  %279 = vmatpush.msra.mxu0 %v49
  %280 = vmatpush.msra.mxu0 %v48
  %281 = vmatpush.msra.mxu0 %v47
  %282 = vmatpush.msra.mxu0 %v46
  %283 = vmatpush.msra.mxu0 %v45
  %284 = vmatmul.f32.gmra.mxu0 %v266
  %v285 = vpop.f32.mrf.mxu0
  %v286 = vadd.f32 %v59, %v285
  %287 = vdwg.mxu0
  %v288 = vxor.u32 %v286, 2147483648
  %v289 = vmul.f32 %v288, 1.442695
  %v290 = vpow.pop %v289
  %v291 = vadd.f32 %v290, 1.0
  %v292 = vrcp.pop %v291
  %v293 = vmul.f32 %v291, %v292
  %v294 = vsub.f32 1.0, %v293
  %v295 = vmul.f32 %v292, %v294
  %v296 = vadd.f32 %v292, %v295
  %vm297 = vweird.f32 %v291
  %vm298 = vweird.f32 %v292
  %vm299 = vmor %vm297, %vm298
  %v300 = vsel %vm299, %v292, %v296
  %v301 = vand.u32 2147483647, %v291
  %vm302 = vcmp.eq.f32.partialorder %v301, 8.507059e+37
  %v303 = vand.u32 %v291, 2147483648
  %v304 = vor.u32 1.1754944e-38, %v303
  %v305 = vsel %vm302, %v304, %v300
  %v306 = vmul.f32 1.0, %v305
  %v307 = vtanh.pop %v286
  %v308 = vmul.f32 %v306, %v183
  %310 = vrot.lane.b32.xlu0 %v307, 64
  %v311 = vpop.permute.xlu0 %310
  %v313 = vmul.f32 %v306, %v311
  %315 = vrot.lane.b32.xlu0 %v313, 32
  %v316 = vpop.permute.xlu0 %315
  %v318 = vadd.f32 %v308, %v316
  %v319 = vtanh.pop %v318
  %321 = vrot.lane.b32.xlu0 %v319, 64
  %v322 = vpop.permute.xlu0 %321
  %v324 = vmul.f32 %v306, %v322
  %s325 = scalar_lea.vmem %s0, 8
  %v326 = vld [vmem:[%s325] sm:$0xf]
  %327 = vrot.lane.b32.xlu0 %v255, 64
  %v328 = vpop.permute.xlu0 %327
  %v330 = vsel %vm62, %v326, %v328
  %v332 = vsel %vm64, %v330, 0
  %334 = vmatpush.msra.mxu0 0.0
  %335 = vmatpush.msra.mxu0 0.0
  %336 = vmatpush.msra.mxu0 0.0
  %337 = vmatpush.msra.mxu0 0.0
  %338 = vmatpush.msra.mxu0 0.0
  %339 = vmatpush.msra.mxu0 0.0
  %340 = vmatpush.msra.mxu0 0.0
  %341 = vmatpush.msra.mxu0 0.0
  %342 = vmatpush.msra.mxu0 %v44
  %343 = vmatpush.msra.mxu0 %v43
  %344 = vmatpush.msra.mxu0 %v42
  %345 = vmatpush.msra.mxu0 %v41
  %346 = vmatpush.msra.mxu0 %v40
  %347 = vmatpush.msra.mxu0 %v39
  %348 = vmatpush.msra.mxu0 %v38
  %349 = vmatpush.msra.mxu0 %v37
  %350 = vmatmul.f32.gmra.mxu0 %v332
  %v351 = vpop.f32.mrf.mxu0
  %v352 = vadd.f32 %v55, %v351
  %353 = vdwg.mxu0
  %v354 = vxor.u32 %v352, 2147483648
  %v355 = vmul.f32 %v354, 1.442695
  %v356 = vpow.pop %v355
  %v357 = vadd.f32 %v356, 1.0
  %v358 = vrcp.pop %v357
  %v359 = vmul.f32 %v357, %v358
  %v360 = vsub.f32 1.0, %v359
  %v361 = vmul.f32 %v358, %v360
  %v362 = vadd.f32 %v358, %v361
  %vm363 = vweird.f32 %v357
  %vm364 = vweird.f32 %v358
  %vm365 = vmor %vm363, %vm364
  %v366 = vsel %vm365, %v358, %v362
  %v367 = vand.u32 2147483647, %v357
  %vm368 = vcmp.eq.f32.partialorder %v367, 8.507059e+37
  %v369 = vand.u32 %v357, 2147483648
  %v370 = vor.u32 1.1754944e-38, %v369
  %v371 = vsel %vm368, %v370, %v366
  %v372 = vmul.f32 1.0, %v371
  %v373 = vtanh.pop %v352
  %v374 = vmul.f32 %v372, %v249
  %376 = vrot.lane.b32.xlu0 %v373, 64
  %v377 = vpop.permute.xlu0 %376
  %v379 = vmul.f32 %v372, %v377
  %381 = vrot.lane.b32.xlu0 %v379, 32
  %v382 = vpop.permute.xlu0 %381
  %v384 = vadd.f32 %v374, %v382
  %v385 = vtanh.pop %v384
  %387 = vrot.lane.b32.xlu0 %v385, 64
  %v388 = vpop.permute.xlu0 %387
  %v390 = vmul.f32 %v372, %v388
  %392 = vrot.lane.b32.xlu0 %v390, 32
  %v393 = vpop.permute.xlu0 %392
  %396 = vrot.lane.b32.xlu0 %v324, 64
  %v397 = vpop.permute.xlu0 %396
  %v399 = vsel %vm62, %v393, %v397
  %v401 = vsel %vm64, %v399, 0
  %403 = vmatpush.msra.mxu0 0.0
  %404 = vmatpush.msra.mxu0 0.0
  %405 = vmatpush.msra.mxu0 0.0
  %406 = vmatpush.msra.mxu0 0.0
  %407 = vmatpush.msra.mxu0 0.0
  %408 = vmatpush.msra.mxu0 0.0
  %409 = vmatpush.msra.mxu0 0.0
  %410 = vmatpush.msra.mxu0 0.0
  %411 = vmatpush.msra.mxu0 %v52
  %412 = vmatpush.msra.mxu0 %v51
  %413 = vmatpush.msra.mxu0 %v50
  %414 = vmatpush.msra.mxu0 %v49
  %415 = vmatpush.msra.mxu0 %v48
  %416 = vmatpush.msra.mxu0 %v47
  %417 = vmatpush.msra.mxu0 %v46
  %418 = vmatpush.msra.mxu0 %v45
  %419 = vmatmul.f32.gmra.mxu0 %v401
  %v420 = vpop.f32.mrf.mxu0
  %v421 = vadd.f32 %v59, %v420
  %422 = vdwg.mxu0
  %v423 = vxor.u32 %v421, 2147483648
  %v424 = vmul.f32 %v423, 1.442695
  %v425 = vpow.pop %v424
  %v426 = vadd.f32 %v425, 1.0
  %v427 = vrcp.pop %v426
  %v428 = vmul.f32 %v426, %v427
  %v429 = vsub.f32 1.0, %v428
  %v430 = vmul.f32 %v427, %v429
  %v431 = vadd.f32 %v427, %v430
  %vm432 = vweird.f32 %v426
  %vm433 = vweird.f32 %v427
  %vm434 = vmor %vm432, %vm433
  %v435 = vsel %vm434, %v427, %v431
  %v436 = vand.u32 2147483647, %v426
  %vm437 = vcmp.eq.f32.partialorder %v436, 8.507059e+37
  %v438 = vand.u32 %v426, 2147483648
  %v439 = vor.u32 1.1754944e-38, %v438
  %v440 = vsel %vm437, %v439, %v435
  %v441 = vmul.f32 1.0, %v440
  %v442 = vtanh.pop %v421
  %v443 = vmul.f32 %v441, %v318
  %445 = vrot.lane.b32.xlu0 %v442, 64
  %v446 = vpop.permute.xlu0 %445
  %v448 = vmul.f32 %v441, %v446
  %450 = vrot.lane.b32.xlu0 %v448, 32
  %v451 = vpop.permute.xlu0 %450
  %v453 = vadd.f32 %v443, %v451
  %v454 = vtanh.pop %v453
  %456 = vrot.lane.b32.xlu0 %v454, 64
  %v457 = vpop.permute.xlu0 %456
  %v459 = vmul.f32 %v441, %v457
  %s460 = scalar_lea.vmem %s0, 12
  %v461 = vld [vmem:[%s460] sm:$0xf]
  %462 = vrot.lane.b32.xlu0 %v390, 64
  %v463 = vpop.permute.xlu0 %462
  %v465 = vsel %vm62, %v461, %v463
  %v467 = vsel %vm64, %v465, 0
  %469 = vmatpush.msra.mxu0 0.0
  %470 = vmatpush.msra.mxu0 0.0
  %471 = vmatpush.msra.mxu0 0.0
  %472 = vmatpush.msra.mxu0 0.0
  %473 = vmatpush.msra.mxu0 0.0
  %474 = vmatpush.msra.mxu0 0.0
  %475 = vmatpush.msra.mxu0 0.0
  %476 = vmatpush.msra.mxu0 0.0
  %477 = vmatpush.msra.mxu0 %v44
  %478 = vmatpush.msra.mxu0 %v43
  %479 = vmatpush.msra.mxu0 %v42
  %480 = vmatpush.msra.mxu0 %v41
  %481 = vmatpush.msra.mxu0 %v40
  %482 = vmatpush.msra.mxu0 %v39
  %483 = vmatpush.msra.mxu0 %v38
  %484 = vmatpush.msra.mxu0 %v37
  %485 = vmatmul.f32.gmra.mxu0 %v467
  %v486 = vpop.f32.mrf.mxu0
  %v487 = vadd.f32 %v55, %v486
  %488 = vdwg.mxu0
  %v489 = vxor.u32 %v487, 2147483648
  %v490 = vmul.f32 %v489, 1.442695
  %v491 = vpow.pop %v490
  %v492 = vadd.f32 %v491, 1.0
  %v493 = vrcp.pop %v492
  %v494 = vmul.f32 %v492, %v493
  %v495 = vsub.f32 1.0, %v494
  %v496 = vmul.f32 %v493, %v495
  %v497 = vadd.f32 %v493, %v496
  %vm498 = vweird.f32 %v492
  %vm499 = vweird.f32 %v493
  %vm500 = vmor %vm498, %vm499
  %v501 = vsel %vm500, %v493, %v497
  %v502 = vand.u32 2147483647, %v492
  %vm503 = vcmp.eq.f32.partialorder %v502, 8.507059e+37
  %v504 = vand.u32 %v492, 2147483648
  %v505 = vor.u32 1.1754944e-38, %v504
  %v506 = vsel %vm503, %v505, %v501
  %v507 = vmul.f32 1.0, %v506
  %v508 = vtanh.pop %v487
  %v509 = vmul.f32 %v507, %v384
  %511 = vrot.lane.b32.xlu0 %v508, 64
  %v512 = vpop.permute.xlu0 %511
  %v514 = vmul.f32 %v507, %v512
  %516 = vrot.lane.b32.xlu0 %v514, 32
  %v517 = vpop.permute.xlu0 %516
  %v519 = vadd.f32 %v509, %v517
  %v520 = vtanh.pop %v519
  %522 = vrot.lane.b32.xlu0 %v520, 64
  %v523 = vpop.permute.xlu0 %522
  %v525 = vmul.f32 %v507, %v523
  %527 = vrot.lane.b32.xlu0 %v525, 32
  %v528 = vpop.permute.xlu0 %527
  %531 = vrot.lane.b32.xlu0 %v459, 64
  %v532 = vpop.permute.xlu0 %531
  %v534 = vsel %vm62, %v528, %v532
  %v536 = vsel %vm64, %v534, 0
  %538 = vmatpush.msra.mxu0 0.0
  %539 = vmatpush.msra.mxu0 0.0
  %540 = vmatpush.msra.mxu0 0.0
  %541 = vmatpush.msra.mxu0 0.0
  %542 = vmatpush.msra.mxu0 0.0
  %543 = vmatpush.msra.mxu0 0.0
  %544 = vmatpush.msra.mxu0 0.0
  %545 = vmatpush.msra.mxu0 0.0
  %546 = vmatpush.msra.mxu0 %v52
  %547 = vmatpush.msra.mxu0 %v51
  %548 = vmatpush.msra.mxu0 %v50
  %549 = vmatpush.msra.mxu0 %v49
  %550 = vmatpush.msra.mxu0 %v48
  %551 = vmatpush.msra.mxu0 %v47
  %552 = vmatpush.msra.mxu0 %v46
  %553 = vmatpush.msra.mxu0 %v45
  %554 = vmatmul.f32.gmra.mxu0 %v536
  %v555 = vpop.f32.mrf.mxu0
  %v556 = vadd.f32 %v59, %v555
  %557 = vdwg.mxu0
  %v558 = vxor.u32 %v556, 2147483648
  %v559 = vmul.f32 %v558, 1.442695
  %v560 = vpow.pop %v559
  %v561 = vadd.f32 %v560, 1.0
  %v562 = vrcp.pop %v561
  %v563 = vmul.f32 %v561, %v562
  %v564 = vsub.f32 1.0, %v563
  %v565 = vmul.f32 %v562, %v564
  %v566 = vadd.f32 %v562, %v565
  %vm567 = vweird.f32 %v561
  %vm568 = vweird.f32 %v562
  %vm569 = vmor %vm567, %vm568
  %v570 = vsel %vm569, %v562, %v566
  %v571 = vand.u32 2147483647, %v561
  %vm572 = vcmp.eq.f32.partialorder %v571, 8.507059e+37
  %v573 = vand.u32 %v561, 2147483648
  %v574 = vor.u32 1.1754944e-38, %v573
  %v575 = vsel %vm572, %v574, %v570
  %v576 = vmul.f32 1.0, %v575
  %v577 = vtanh.pop %v556
  %v578 = vmul.f32 %v576, %v453
  %580 = vrot.lane.b32.xlu0 %v577, 64
  %v581 = vpop.permute.xlu0 %580
  %v583 = vmul.f32 %v576, %v581
  %585 = vrot.lane.b32.xlu0 %v583, 32
  %v586 = vpop.permute.xlu0 %585
  %v588 = vadd.f32 %v578, %v586
  %v589 = vtanh.pop %v588
  %591 = vrot.lane.b32.xlu0 %v589, 64
  %v592 = vpop.permute.xlu0 %591
  %v594 = vmul.f32 %v576, %v592
  %s595 = scalar_lea.vmem %s0, 16
  %v596 = vld [vmem:[%s595] sm:$0xf]
  %597 = vrot.lane.b32.xlu0 %v525, 64
  %v598 = vpop.permute.xlu0 %597
  %v600 = vsel %vm62, %v596, %v598
  %v602 = vsel %vm64, %v600, 0
  %604 = vmatpush.msra.mxu0 0.0
  %605 = vmatpush.msra.mxu0 0.0
  %606 = vmatpush.msra.mxu0 0.0
  %607 = vmatpush.msra.mxu0 0.0
  %608 = vmatpush.msra.mxu0 0.0
  %609 = vmatpush.msra.mxu0 0.0
  %610 = vmatpush.msra.mxu0 0.0
  %611 = vmatpush.msra.mxu0 0.0
  %612 = vmatpush.msra.mxu0 %v44
  %613 = vmatpush.msra.mxu0 %v43
  %614 = vmatpush.msra.mxu0 %v42
  %615 = vmatpush.msra.mxu0 %v41
  %616 = vmatpush.msra.mxu0 %v40
  %617 = vmatpush.msra.mxu0 %v39
  %618 = vmatpush.msra.mxu0 %v38
  %619 = vmatpush.msra.mxu0 %v37
  %620 = vmatmul.f32.gmra.mxu0 %v602
  %v621 = vpop.f32.mrf.mxu0
  %v622 = vadd.f32 %v55, %v621
  %623 = vdwg.mxu0
  %v624 = vxor.u32 %v622, 2147483648
  %v625 = vmul.f32 %v624, 1.442695
  %v626 = vpow.pop %v625
  %v627 = vadd.f32 %v626, 1.0
  %v628 = vrcp.pop %v627
  %v629 = vmul.f32 %v627, %v628
  %v630 = vsub.f32 1.0, %v629
  %v631 = vmul.f32 %v628, %v630
  %v632 = vadd.f32 %v628, %v631
  %vm633 = vweird.f32 %v627
  %vm634 = vweird.f32 %v628
  %vm635 = vmor %vm633, %vm634
  %v636 = vsel %vm635, %v628, %v632
  %v637 = vand.u32 2147483647, %v627
  %vm638 = vcmp.eq.f32.partialorder %v637, 8.507059e+37
  %v639 = vand.u32 %v627, 2147483648
  %v640 = vor.u32 1.1754944e-38, %v639
  %v641 = vsel %vm638, %v640, %v636
  %v642 = vmul.f32 1.0, %v641
  %v643 = vtanh.pop %v622
  %v644 = vmul.f32 %v642, %v519
  %646 = vrot.lane.b32.xlu0 %v643, 64
  %v647 = vpop.permute.xlu0 %646
  %v649 = vmul.f32 %v642, %v647
  %651 = vrot.lane.b32.xlu0 %v649, 32
  %v652 = vpop.permute.xlu0 %651
  %v654 = vadd.f32 %v644, %v652
  %v655 = vtanh.pop %v654
  %657 = vrot.lane.b32.xlu0 %v655, 64
  %v658 = vpop.permute.xlu0 %657
  %v660 = vmul.f32 %v642, %v658
  %662 = vrot.lane.b32.xlu0 %v660, 32
  %v663 = vpop.permute.xlu0 %662
  %666 = vrot.lane.b32.xlu0 %v594, 64
  %v667 = vpop.permute.xlu0 %666
  %v669 = vsel %vm62, %v663, %v667
  %v671 = vsel %vm64, %v669, 0
  %673 = vmatpush.msra.mxu0 0.0
  %674 = vmatpush.msra.mxu0 0.0
  %675 = vmatpush.msra.mxu0 0.0
  %676 = vmatpush.msra.mxu0 0.0
  %677 = vmatpush.msra.mxu0 0.0
  %678 = vmatpush.msra.mxu0 0.0
  %679 = vmatpush.msra.mxu0 0.0
  %680 = vmatpush.msra.mxu0 0.0
  %681 = vmatpush.msra.mxu0 %v52
  %682 = vmatpush.msra.mxu0 %v51
  %683 = vmatpush.msra.mxu0 %v50
  %684 = vmatpush.msra.mxu0 %v49
  %685 = vmatpush.msra.mxu0 %v48
  %686 = vmatpush.msra.mxu0 %v47
  %687 = vmatpush.msra.mxu0 %v46
  %688 = vmatpush.msra.mxu0 %v45
  %689 = vmatmul.f32.gmra.mxu0 %v671
  %v690 = vpop.f32.mrf.mxu0
  %v691 = vadd.f32 %v59, %v690
  %692 = vdwg.mxu0
  %v693 = vxor.u32 %v691, 2147483648
  %v694 = vmul.f32 %v693, 1.442695
  %v695 = vpow.pop %v694
  %v696 = vadd.f32 %v695, 1.0
  %v697 = vrcp.pop %v696
  %v698 = vmul.f32 %v696, %v697
  %v699 = vsub.f32 1.0, %v698
  %v700 = vmul.f32 %v697, %v699
  %v701 = vadd.f32 %v697, %v700
  %vm702 = vweird.f32 %v696
  %vm703 = vweird.f32 %v697
  %vm704 = vmor %vm702, %vm703
  %v705 = vsel %vm704, %v697, %v701
  %v706 = vand.u32 2147483647, %v696
  %vm707 = vcmp.eq.f32.partialorder %v706, 8.507059e+37
  %v708 = vand.u32 %v696, 2147483648
  %v709 = vor.u32 1.1754944e-38, %v708
  %v710 = vsel %vm707, %v709, %v705
  %v711 = vmul.f32 1.0, %v710
  %v712 = vtanh.pop %v691
  %v713 = vmul.f32 %v711, %v588
  %715 = vrot.lane.b32.xlu0 %v712, 64
  %v716 = vpop.permute.xlu0 %715
  %v718 = vmul.f32 %v711, %v716
  %720 = vrot.lane.b32.xlu0 %v718, 32
  %v721 = vpop.permute.xlu0 %720
  %v723 = vadd.f32 %v713, %v721
  %v724 = vtanh.pop %v723
  %726 = vrot.lane.b32.xlu0 %v724, 64
  %v727 = vpop.permute.xlu0 %726
  %v729 = vmul.f32 %v711, %v727
  %s730 = scalar_lea.vmem %s0, 20
  %v731 = vld [vmem:[%s730] sm:$0xf]
  %732 = vrot.lane.b32.xlu0 %v660, 64
  %v733 = vpop.permute.xlu0 %732
  %v735 = vsel %vm62, %v731, %v733
  %v737 = vsel %vm64, %v735, 0
  %739 = vmatpush.msra.mxu0 0.0
  %740 = vmatpush.msra.mxu0 0.0
  %741 = vmatpush.msra.mxu0 0.0
  %742 = vmatpush.msra.mxu0 0.0
  %743 = vmatpush.msra.mxu0 0.0
  %744 = vmatpush.msra.mxu0 0.0
  %745 = vmatpush.msra.mxu0 0.0
  %746 = vmatpush.msra.mxu0 0.0
  %747 = vmatpush.msra.mxu0 %v44
  %748 = vmatpush.msra.mxu0 %v43
  %749 = vmatpush.msra.mxu0 %v42
  %750 = vmatpush.msra.mxu0 %v41
  %751 = vmatpush.msra.mxu0 %v40
  %752 = vmatpush.msra.mxu0 %v39
  %753 = vmatpush.msra.mxu0 %v38
  %754 = vmatpush.msra.mxu0 %v37
  %755 = vmatmul.f32.gmra.mxu0 %v737
  %v756 = vpop.f32.mrf.mxu0
  %v757 = vadd.f32 %v55, %v756
  %758 = vdwg.mxu0
  %v759 = vxor.u32 %v757, 2147483648
  %v760 = vmul.f32 %v759, 1.442695
  %v761 = vpow.pop %v760
  %v762 = vadd.f32 %v761, 1.0
  %v763 = vrcp.pop %v762
  %v764 = vmul.f32 %v762, %v763
  %v765 = vsub.f32 1.0, %v764
  %v766 = vmul.f32 %v763, %v765
  %v767 = vadd.f32 %v763, %v766
  %vm768 = vweird.f32 %v762
  %vm769 = vweird.f32 %v763
  %vm770 = vmor %vm768, %vm769
  %v771 = vsel %vm770, %v763, %v767
  %v772 = vand.u32 2147483647, %v762
  %vm773 = vcmp.eq.f32.partialorder %v772, 8.507059e+37
  %v774 = vand.u32 %v762, 2147483648
  %v775 = vor.u32 1.1754944e-38, %v774
  %v776 = vsel %vm773, %v775, %v771
  %v777 = vmul.f32 1.0, %v776
  %v778 = vtanh.pop %v757
  %v779 = vmul.f32 %v777, %v654
  %781 = vrot.lane.b32.xlu0 %v778, 64
  %v782 = vpop.permute.xlu0 %781
  %v784 = vmul.f32 %v777, %v782
  %786 = vrot.lane.b32.xlu0 %v784, 32
  %v787 = vpop.permute.xlu0 %786
  %v789 = vadd.f32 %v779, %v787
  %v790 = vtanh.pop %v789
  %792 = vrot.lane.b32.xlu0 %v790, 64
  %v793 = vpop.permute.xlu0 %792
  %v795 = vmul.f32 %v777, %v793
  %797 = vrot.lane.b32.xlu0 %v795, 32
  %v798 = vpop.permute.xlu0 %797
  %801 = vrot.lane.b32.xlu0 %v729, 64
  %v802 = vpop.permute.xlu0 %801
  %v804 = vsel %vm62, %v798, %v802
  %v806 = vsel %vm64, %v804, 0
  %808 = vmatpush.msra.mxu0 0.0
  %809 = vmatpush.msra.mxu0 0.0
  %810 = vmatpush.msra.mxu0 0.0
  %811 = vmatpush.msra.mxu0 0.0
  %812 = vmatpush.msra.mxu0 0.0
  %813 = vmatpush.msra.mxu0 0.0
  %814 = vmatpush.msra.mxu0 0.0
  %815 = vmatpush.msra.mxu0 0.0
  %816 = vmatpush.msra.mxu0 %v52
  %817 = vmatpush.msra.mxu0 %v51
  %818 = vmatpush.msra.mxu0 %v50
  %819 = vmatpush.msra.mxu0 %v49
  %820 = vmatpush.msra.mxu0 %v48
  %821 = vmatpush.msra.mxu0 %v47
  %822 = vmatpush.msra.mxu0 %v46
  %823 = vmatpush.msra.mxu0 %v45
  %824 = vmatmul.f32.gmra.mxu0 %v806
  %v825 = vpop.f32.mrf.mxu0
  %v826 = vadd.f32 %v59, %v825
  %827 = vdwg.mxu0
  %v828 = vxor.u32 %v826, 2147483648
  %v829 = vmul.f32 %v828, 1.442695
  %v830 = vpow.pop %v829
  %v831 = vadd.f32 %v830, 1.0
  %v832 = vrcp.pop %v831
  %v833 = vmul.f32 %v831, %v832
  %v834 = vsub.f32 1.0, %v833
  %v835 = vmul.f32 %v832, %v834
  %v836 = vadd.f32 %v832, %v835
  %vm837 = vweird.f32 %v831
  %vm838 = vweird.f32 %v832
  %vm839 = vmor %vm837, %vm838
  %v840 = vsel %vm839, %v832, %v836
  %v841 = vand.u32 2147483647, %v831
  %vm842 = vcmp.eq.f32.partialorder %v841, 8.507059e+37
  %v843 = vand.u32 %v831, 2147483648
  %v844 = vor.u32 1.1754944e-38, %v843
  %v845 = vsel %vm842, %v844, %v840
  %v846 = vmul.f32 1.0, %v845
  %v847 = vtanh.pop %v826
  %v848 = vmul.f32 %v846, %v723
  %850 = vrot.lane.b32.xlu0 %v847, 64
  %v851 = vpop.permute.xlu0 %850
  %v853 = vmul.f32 %v846, %v851
  %855 = vrot.lane.b32.xlu0 %v853, 32
  %v856 = vpop.permute.xlu0 %855
  %v858 = vadd.f32 %v848, %v856
  %v859 = vtanh.pop %v858
  %861 = vrot.lane.b32.xlu0 %v859, 64
  %v862 = vpop.permute.xlu0 %861
  %v864 = vmul.f32 %v846, %v862
  %s865 = scalar_lea.vmem %s0, 24
  %v866 = vld [vmem:[%s865] sm:$0xf]
  %867 = vrot.lane.b32.xlu0 %v795, 64
  %v868 = vpop.permute.xlu0 %867
  %v870 = vsel %vm62, %v866, %v868
  %v872 = vsel %vm64, %v870, 0
  %874 = vmatpush.msra.mxu0 0.0
  %875 = vmatpush.msra.mxu0 0.0
  %876 = vmatpush.msra.mxu0 0.0
  %877 = vmatpush.msra.mxu0 0.0
  %878 = vmatpush.msra.mxu0 0.0
  %879 = vmatpush.msra.mxu0 0.0
  %880 = vmatpush.msra.mxu0 0.0
  %881 = vmatpush.msra.mxu0 0.0
  %882 = vmatpush.msra.mxu0 %v44
  %883 = vmatpush.msra.mxu0 %v43
  %884 = vmatpush.msra.mxu0 %v42
  %885 = vmatpush.msra.mxu0 %v41
  %886 = vmatpush.msra.mxu0 %v40
  %887 = vmatpush.msra.mxu0 %v39
  %888 = vmatpush.msra.mxu0 %v38
  %889 = vmatpush.msra.mxu0 %v37
  %890 = vmatmul.f32.gmra.mxu0 %v872
  %v891 = vpop.f32.mrf.mxu0
  %v892 = vadd.f32 %v55, %v891
  %893 = vdwg.mxu0
  %v894 = vxor.u32 %v892, 2147483648
  %v895 = vmul.f32 %v894, 1.442695
  %v896 = vpow.pop %v895
  %v897 = vadd.f32 %v896, 1.0
  %v898 = vrcp.pop %v897
  %v899 = vmul.f32 %v897, %v898
  %v900 = vsub.f32 1.0, %v899
  %v901 = vmul.f32 %v898, %v900
  %v902 = vadd.f32 %v898, %v901
  %vm903 = vweird.f32 %v897
  %vm904 = vweird.f32 %v898
  %vm905 = vmor %vm903, %vm904
  %v906 = vsel %vm905, %v898, %v902
  %v907 = vand.u32 2147483647, %v897
  %vm908 = vcmp.eq.f32.partialorder %v907, 8.507059e+37
  %v909 = vand.u32 %v897, 2147483648
  %v910 = vor.u32 1.1754944e-38, %v909
  %v911 = vsel %vm908, %v910, %v906
  %v912 = vmul.f32 1.0, %v911
  %v913 = vtanh.pop %v892
  %v914 = vmul.f32 %v912, %v789
  %916 = vrot.lane.b32.xlu0 %v913, 64
  %v917 = vpop.permute.xlu0 %916
  %v919 = vmul.f32 %v912, %v917
  %921 = vrot.lane.b32.xlu0 %v919, 32
  %v922 = vpop.permute.xlu0 %921
  %v924 = vadd.f32 %v914, %v922
  %v925 = vtanh.pop %v924
  %927 = vrot.lane.b32.xlu0 %v925, 64
  %v928 = vpop.permute.xlu0 %927
  %v930 = vmul.f32 %v912, %v928
  %932 = vrot.lane.b32.xlu0 %v930, 32
  %v933 = vpop.permute.xlu0 %932
  %936 = vrot.lane.b32.xlu0 %v864, 64
  %v937 = vpop.permute.xlu0 %936
  %v939 = vsel %vm62, %v933, %v937
  %v941 = vsel %vm64, %v939, 0
  %943 = vmatpush.msra.mxu0 0.0
  %944 = vmatpush.msra.mxu0 0.0
  %945 = vmatpush.msra.mxu0 0.0
  %946 = vmatpush.msra.mxu0 0.0
  %947 = vmatpush.msra.mxu0 0.0
  %948 = vmatpush.msra.mxu0 0.0
  %949 = vmatpush.msra.mxu0 0.0
  %950 = vmatpush.msra.mxu0 0.0
  %951 = vmatpush.msra.mxu0 %v52
  %952 = vmatpush.msra.mxu0 %v51
  %953 = vmatpush.msra.mxu0 %v50
  %954 = vmatpush.msra.mxu0 %v49
  %955 = vmatpush.msra.mxu0 %v48
  %956 = vmatpush.msra.mxu0 %v47
  %957 = vmatpush.msra.mxu0 %v46
  %958 = vmatpush.msra.mxu0 %v45
  %959 = vmatmul.f32.gmra.mxu0 %v941
  %v960 = vpop.f32.mrf.mxu0
  %v961 = vadd.f32 %v59, %v960
  %962 = vdwg.mxu0
  %v963 = vxor.u32 %v961, 2147483648
  %v964 = vmul.f32 %v963, 1.442695
  %v965 = vpow.pop %v964
  %v966 = vadd.f32 %v965, 1.0
  %v967 = vrcp.pop %v966
  %v968 = vmul.f32 %v966, %v967
  %v969 = vsub.f32 1.0, %v968
  %v970 = vmul.f32 %v967, %v969
  %v971 = vadd.f32 %v967, %v970
  %vm972 = vweird.f32 %v966
  %vm973 = vweird.f32 %v967
  %vm974 = vmor %vm972, %vm973
  %v975 = vsel %vm974, %v967, %v971
  %v976 = vand.u32 2147483647, %v966
  %vm977 = vcmp.eq.f32.partialorder %v976, 8.507059e+37
  %v978 = vand.u32 %v966, 2147483648
  %v979 = vor.u32 1.1754944e-38, %v978
  %v980 = vsel %vm977, %v979, %v975
  %v981 = vmul.f32 1.0, %v980
  %v982 = vtanh.pop %v961
  %v983 = vmul.f32 %v981, %v858
  %985 = vrot.lane.b32.xlu0 %v982, 64
  %v986 = vpop.permute.xlu0 %985
  %v988 = vmul.f32 %v981, %v986
  %990 = vrot.lane.b32.xlu0 %v988, 32
  %v991 = vpop.permute.xlu0 %990
  %v993 = vadd.f32 %v983, %v991
  %v994 = vtanh.pop %v993
  %996 = vrot.lane.b32.xlu0 %v994, 64
  %v997 = vpop.permute.xlu0 %996
  %v999 = vmul.f32 %v981, %v997
  %s1000 = scalar_lea.vmem %s0, 28
  %v1001 = vld [vmem:[%s1000] sm:$0xf]
  %1002 = vrot.lane.b32.xlu0 %v930, 64
  %v1003 = vpop.permute.xlu0 %1002
  %v1005 = vsel %vm62, %v1001, %v1003
  %v1007 = vsel %vm64, %v1005, 0
  %1009 = vmatpush.msra.mxu0 0.0
  %1010 = vmatpush.msra.mxu0 0.0
  %1011 = vmatpush.msra.mxu0 0.0
  %1012 = vmatpush.msra.mxu0 0.0
  %1013 = vmatpush.msra.mxu0 0.0
  %1014 = vmatpush.msra.mxu0 0.0
  %1015 = vmatpush.msra.mxu0 0.0
  %1016 = vmatpush.msra.mxu0 0.0
  %1017 = vmatpush.msra.mxu0 %v44
  %1018 = vmatpush.msra.mxu0 %v43
  %1019 = vmatpush.msra.mxu0 %v42
  %1020 = vmatpush.msra.mxu0 %v41
  %1021 = vmatpush.msra.mxu0 %v40
  %1022 = vmatpush.msra.mxu0 %v39
  %1023 = vmatpush.msra.mxu0 %v38
  %1024 = vmatpush.msra.mxu0 %v37
  %1025 = vmatmul.f32.gmra.mxu0 %v1007
  %v1026 = vpop.f32.mrf.mxu0
  %v1027 = vadd.f32 %v55, %v1026
  %1028 = vdwg.mxu0
  %v1029 = vxor.u32 %v1027, 2147483648
  %v1030 = vmul.f32 %v1029, 1.442695
  %v1031 = vpow.pop %v1030
  %v1032 = vadd.f32 %v1031, 1.0
  %v1033 = vrcp.pop %v1032
  %v1034 = vmul.f32 %v1032, %v1033
  %v1035 = vsub.f32 1.0, %v1034
  %v1036 = vmul.f32 %v1033, %v1035
  %v1037 = vadd.f32 %v1033, %v1036
  %vm1038 = vweird.f32 %v1032
  %vm1039 = vweird.f32 %v1033
  %vm1040 = vmor %vm1038, %vm1039
  %v1041 = vsel %vm1040, %v1033, %v1037
  %v1042 = vand.u32 2147483647, %v1032
  %vm1043 = vcmp.eq.f32.partialorder %v1042, 8.507059e+37
  %v1044 = vand.u32 %v1032, 2147483648
  %v1045 = vor.u32 1.1754944e-38, %v1044
  %v1046 = vsel %vm1043, %v1045, %v1041
  %v1047 = vmul.f32 1.0, %v1046
  %v1048 = vtanh.pop %v1027
  %v1049 = vmul.f32 %v1047, %v924
  %1051 = vrot.lane.b32.xlu0 %v1048, 64
  %v1052 = vpop.permute.xlu0 %1051
  %v1054 = vmul.f32 %v1047, %v1052
  %1056 = vrot.lane.b32.xlu0 %v1054, 32
  %v1057 = vpop.permute.xlu0 %1056
  %v1059 = vadd.f32 %v1049, %v1057
  %v1060 = vtanh.pop %v1059
  %1062 = vrot.lane.b32.xlu0 %v1060, 64
  %v1063 = vpop.permute.xlu0 %1062
  %v1065 = vmul.f32 %v1047, %v1063
  %1067 = vrot.lane.b32.xlu0 %v1065, 32
  %v1068 = vpop.permute.xlu0 %1067
  %1071 = vrot.lane.b32.xlu0 %v999, 64
  %v1072 = vpop.permute.xlu0 %1071
  %v1074 = vsel %vm62, %v1068, %v1072
  %v1076 = vsel %vm64, %v1074, 0
  %1078 = vmatpush.msra.mxu0 0.0
  %1079 = vmatpush.msra.mxu0 0.0
  %1080 = vmatpush.msra.mxu0 0.0
  %1081 = vmatpush.msra.mxu0 0.0
  %1082 = vmatpush.msra.mxu0 0.0
  %1083 = vmatpush.msra.mxu0 0.0
  %1084 = vmatpush.msra.mxu0 0.0
  %1085 = vmatpush.msra.mxu0 0.0
  %1086 = vmatpush.msra.mxu0 %v52
  %1087 = vmatpush.msra.mxu0 %v51
  %1088 = vmatpush.msra.mxu0 %v50
  %1089 = vmatpush.msra.mxu0 %v49
  %1090 = vmatpush.msra.mxu0 %v48
  %1091 = vmatpush.msra.mxu0 %v47
  %1092 = vmatpush.msra.mxu0 %v46
  %1093 = vmatpush.msra.mxu0 %v45
  %1094 = vmatmul.f32.gmra.mxu0 %v1076
  %v1095 = vpop.f32.mrf.mxu0
  %v1096 = vadd.f32 %v59, %v1095
  %1097 = vdwg.mxu0
  %v1098 = vxor.u32 %v1096, 2147483648
  %v1099 = vmul.f32 %v1098, 1.442695
  %v1100 = vpow.pop %v1099
  %v1101 = vadd.f32 %v1100, 1.0
  %v1102 = vrcp.pop %v1101
  %v1103 = vmul.f32 %v1101, %v1102
  %v1104 = vsub.f32 1.0, %v1103
  %v1105 = vmul.f32 %v1102, %v1104
  %v1106 = vadd.f32 %v1102, %v1105
  %vm1107 = vweird.f32 %v1101
  %vm1108 = vweird.f32 %v1102
  %vm1109 = vmor %vm1107, %vm1108
  %v1110 = vsel %vm1109, %v1102, %v1106
  %v1111 = vand.u32 2147483647, %v1101
  %vm1112 = vcmp.eq.f32.partialorder %v1111, 8.507059e+37
  %v1113 = vand.u32 %v1101, 2147483648
  %v1114 = vor.u32 1.1754944e-38, %v1113
  %v1115 = vsel %vm1112, %v1114, %v1110
  %v1116 = vmul.f32 1.0, %v1115
  %v1117 = vtanh.pop %v1096
  %v1118 = vmul.f32 %v1116, %v993
  %1120 = vrot.lane.b32.xlu0 %v1117, 64
  %v1121 = vpop.permute.xlu0 %1120
  %v1123 = vmul.f32 %v1116, %v1121
  %1125 = vrot.lane.b32.xlu0 %v1123, 32
  %v1126 = vpop.permute.xlu0 %1125
  %v1128 = vadd.f32 %v1118, %v1126
  %v1129 = vtanh.pop %v1128
  %1131 = vrot.lane.b32.xlu0 %v1129, 64
  %v1132 = vpop.permute.xlu0 %1131
  %v1134 = vmul.f32 %v1116, %v1132
  %v1135 = vld [vmem:[%s5] sm:$0xff]
  %v1136 = vld [vmem:[%s5 + $0x8] sm:$0xff]
  %v1137 = vld [vmem:[%s5 + $0x10] sm:$0xff]
  %v1138 = vld [vmem:[%s5 + $0x18] sm:$0xff]
  %v1139 = vld [vmem:[%s6] sm:$0xff]
  %v1140 = vld [vmem:[%s6 + $0x8] sm:$0xff]
  %v1141 = vld [vmem:[%s6 + $0x10] sm:$0xff]
  %v1142 = vld [vmem:[%s6 + $0x18] sm:$0xff]
  %v1144 = vrot.slane %v1134, 2
  %1145 = vrot.lane.b32.xlu0 %v1144, 32
  %v1146 = vpop.permute.xlu0 %1145
  %v1147 = vsel %vm62, %v1146, 0
  %1149 = vmatpush.msra.mxu0 0.0
  %1150 = vmatpush.msra.mxu0 0.0
  %1151 = vmatpush.msra.mxu0 0.0
  %1152 = vmatpush.msra.mxu0 0.0
  %1153 = vmatpush.msra.mxu0 0.0
  %1154 = vmatpush.msra.mxu0 0.0
  %1155 = vmatpush.msra.mxu0 0.0
  %1156 = vmatpush.msra.mxu0 0.0
  %1157 = vmatpush.msra.mxu0 0.0
  %1158 = vmatpush.msra.mxu0 0.0
  %1159 = vmatpush.msra.mxu0 0.0
  %1160 = vmatpush.msra.mxu0 0.0
  %1161 = vmatpush.msra.mxu0 %v1142
  %1162 = vmatpush.msra.mxu0 %v1141
  %1163 = vmatpush.msra.mxu0 %v1140
  %1164 = vmatpush.msra.mxu0 %v1139
  %1165 = vmatmul.f32.gmra.mxu0 %v1147
  %v1166 = vpop.f32.mrf.mxu0
  %v1167 = vadd.f32 0.0, %v1166
  %1168 = vdwg.mxu0
  %1169 = vrot.lane.b32.xlu0 %v1134, 32
  %v1170 = vpop.permute.xlu0 %1169
  %v1171 = vsel %vm62, %v1170, 0
  %1173 = vmatpush.msra.mxu0 0.0
  %1174 = vmatpush.msra.mxu0 0.0
  %1175 = vmatpush.msra.mxu0 0.0
  %1176 = vmatpush.msra.mxu0 0.0
  %1177 = vmatpush.msra.mxu0 0.0
  %1178 = vmatpush.msra.mxu0 0.0
  %1179 = vmatpush.msra.mxu0 0.0
  %1180 = vmatpush.msra.mxu0 0.0
  %1181 = vmatpush.msra.mxu0 0.0
  %1182 = vmatpush.msra.mxu0 0.0
  %1183 = vmatpush.msra.mxu0 0.0
  %1184 = vmatpush.msra.mxu0 0.0
  %1185 = vmatpush.msra.mxu0 %v1138
  %1186 = vmatpush.msra.mxu0 %v1137
  %1187 = vmatpush.msra.mxu0 %v1136
  %1188 = vmatpush.msra.mxu0 %v1135
  %1189 = vmatmul.f32.gmra.mxu0 %v1171
  %v1190 = vpop.f32.mrf.mxu0
  %v1191 = vadd.f32 %v1167, %v1190
  %1192 = vdwg.mxu0
  %v1193 = vld [vmem:[%s7] sm:$0x1]
  %v1195 = vperm.slane %v1193, 0
  %v1197 = vadd.f32 %v1191, %v1195
  %v1198 = vmax.f32 %v1197, 0.0
  %v1199 = vld [vmem:[%s8] sm:$0xff]
  %v1200 = vld [vmem:[%s8 + $0x8] sm:$0xff]
  %v1201 = vld [vmem:[%s8 + $0x10] sm:$0xff]
  %v1202 = vld [vmem:[%s8 + $0x18] sm:$0xff]
  %v1203 = vld [vmem:[#allocation2] sm:$0x1]
  %v1205 = vperm.slane %v1203, 0
  %v1208 = vsel %vm62, %v1198, 0
  %1210 = vmatpush.msra.mxu0 0.0
  %1211 = vmatpush.msra.mxu0 0.0
  %1212 = vmatpush.msra.mxu0 0.0
  %1213 = vmatpush.msra.mxu0 0.0
  %1214 = vmatpush.msra.mxu0 0.0
  %1215 = vmatpush.msra.mxu0 0.0
  %1216 = vmatpush.msra.mxu0 0.0
  %1217 = vmatpush.msra.mxu0 0.0
  %1218 = vmatpush.msra.mxu0 0.0
  %1219 = vmatpush.msra.mxu0 0.0
  %1220 = vmatpush.msra.mxu0 0.0
  %1221 = vmatpush.msra.mxu0 0.0
  %1222 = vmatpush.msra.mxu0 %v1202
  %1223 = vmatpush.msra.mxu0 %v1201
  %1224 = vmatpush.msra.mxu0 %v1200
  %1225 = vmatpush.msra.mxu0 %v1199
  %1226 = vmatmul.f32.gmra.mxu0 %v1208
  %v1227 = vpop.f32.mrf.mxu0
  %v1228 = vadd.f32 %v1205, %v1227
  %1229 = vdwg.mxu0
  %1231 = vset.pattern.permute.xlu0 0
  %1232 = vperm.xlu0 %1231, %v1228
  %v1233 = vpop.permute.xlu0 %1232
  %1235 = vst [vmem:[%s10] sm:$0x3] %v1233
  // Predicated region
  $region42: #{two_head_lstm_forward.1} parent=0 // pred_check
    _
  $region43: #{two_head_lstm_forward.1} parent=0 // pred_check_branch
    %1237 = sbr.rel (0) target = $region45
  $region44: #{two_head_lstm_forward.1} parent=0 // pred_region
    _
  $region45: #{two_head_lstm_forward.1} parent=0 // pred_fallthru
    _
  // Predicated region
  $region46: #{two_head_lstm_forward.1} parent=0 // pred_check
    _
  $region47: #{two_head_lstm_forward.1} parent=0 // pred_check_branch
    %1239 = sbr.rel (0) target = $region49
  $region48: #{two_head_lstm_forward.1} parent=0 // pred_region
    _
  $region49: #{two_head_lstm_forward.1} parent=0 // pred_fallthru
    _

</llo_original>
